<compile_context>
chip_gen: v7x
topology: tpu7x:2x2x1
jax: 0.10.0
libtpu: 0.0.40
codegen_flags: <defaults>
</compile_context>

<pallas_src>
import functools
import math

import jax
import jax.numpy as jnp
from jax import lax
from jax.experimental import pallas as pl
from jax.experimental.pallas import tpu as pltpu


def _mr_forward_kernel(img_re_ref, img_im_ref,
                       csm_re_ref, csm_im_ref,
                       traj_ref,
                       out_re_ref, out_im_ref,
                       *, ch, d, h, w, tk, inv_sqrt_n):
    n = h * w
    m = ch * d

    # ---- CSE: coil images = image * csm  (complex multiply, broadcast over ch) ----
    img_re = img_re_ref[0]                      # (d, n)  f32
    img_im = img_im_ref[0]
    csm_re = csm_re_ref[0]                      # (ch, d, n) f32
    csm_im = csm_im_ref[0]

    coil_re = img_re[None, :, :] * csm_re - img_im[None, :, :] * csm_im   # (ch, d, n)
    coil_im = img_re[None, :, :] * csm_im + img_im[None, :, :] * csm_re

    coil_re = coil_re.reshape(m, n).astype(jnp.bfloat16)
    coil_im = coil_im.reshape(m, n).astype(jnp.bfloat16)

    # ---- factorized NUFFT basis for this K-tile ----
    traj = traj_ref[0]                          # (2, tk) f32
    kx = traj[0:1, :]                           # (1, tk)
    ky = traj[1:2, :]

    x = lax.broadcasted_iota(jnp.int32, (h, tk), 0).astype(jnp.float32) - float(h // 2)
    y = lax.broadcasted_iota(jnp.int32, (w, tk), 0).astype(jnp.float32) - float(w // 2)

    px = x * kx                                  # (h, tk)
    py = y * ky                                  # (w, tk)
    cx, sx = jnp.cos(px), jnp.sin(px)
    cy, sy = jnp.cos(py), jnp.sin(py)

    # exp(-i*(px+py)) = (cx*cy - sx*sy) - i*(sx*cy + cx*sy)
    a_re = (cx[:, None, :] * cy[None, :, :]
            - sx[:, None, :] * sy[None, :, :]).reshape(n, tk)
    a_im = -(sx[:, None, :] * cy[None, :, :]
             + cx[:, None, :] * sy[None, :, :]).reshape(n, tk)

    basis = jnp.concatenate(
        [a_re.astype(jnp.bfloat16), a_im.astype(jnp.bfloat16)], axis=-1)   # (n, 2*tk)

    # ---- complex matmul via two wide bf16 MXU matmuls (f32 accumulation) ----
    p = jnp.dot(coil_re, basis, preferred_element_type=jnp.float32)   # (m, 2*tk)
    q = jnp.dot(coil_im, basis, preferred_element_type=jnp.float32)   # (m, 2*tk)

    ks_re = (p[:, :tk] - q[:, tk:]) * inv_sqrt_n
    ks_im = (p[:, tk:] + q[:, :tk]) * inv_sqrt_n

    out_re_ref[0] = ks_re.reshape(ch, d, tk)
    out_im_ref[0] = ks_im.reshape(ch, d, tk)


def mr_forward_model_static(image, csm, kspace_traj, *, tile_k=None):
    """forward(params) of MR_Forward_Model_Static: S (CSE) then N (type-2 NUFFT, ortho)."""
    t, d, h, w = image.shape
    ch = csm.shape[1]
    k = kspace_traj.shape[-1]
    n = h * w

    # Pad K to a lane-dense multiple of 128 and pick a K tile that divides it.
    k_pad = ((k + 127) // 128) * 128
    if tile_k is None:
        tile_k = 128
        for cand in (512, 384, 256):
            if k_pad % cand == 0:
                tile_k = cand
                break
    assert k_pad % tile_k == 0

    img = image.reshape(t, d, n)
    csm_f = csm.reshape(t, ch, d, n)

    img_re = jnp.real(img).astype(jnp.float32)
    img_im = jnp.imag(img).astype(jnp.float32)
    csm_re = jnp.real(csm_f).astype(jnp.float32)
    csm_im = jnp.imag(csm_f).astype(jnp.float32)
    traj = kspace_traj.astype(jnp.float32)
    if k_pad != k:
        traj = jnp.pad(traj, ((0, 0), (0, 0), (0, k_pad - k)))

    kernel = functools.partial(
        _mr_forward_kernel, ch=ch, d=d, h=h, w=w, tk=tile_k,
        inv_sqrt_n=1.0 / math.sqrt(n))

    out_re, out_im = pl.pallas_call(
        kernel,
        out_shape=(jax.ShapeDtypeStruct((t, ch, d, k_pad), jnp.float32),
                   jax.ShapeDtypeStruct((t, ch, d, k_pad), jnp.float32)),
        grid_spec=pltpu.PrefetchScalarGridSpec(
            num_scalar_prefetch=0,
            grid=(t, k_pad // tile_k),
            in_specs=[
                pl.BlockSpec((1, d, n), lambda i, j: (i, 0, 0)),
                pl.BlockSpec((1, d, n), lambda i, j: (i, 0, 0)),
                pl.BlockSpec((1, ch, d, n), lambda i, j: (i, 0, 0, 0)),
                pl.BlockSpec((1, ch, d, n), lambda i, j: (i, 0, 0, 0)),
                pl.BlockSpec((1, 2, tile_k), lambda i, j: (i, 0, j)),
            ],
            out_specs=[
                pl.BlockSpec((1, ch, d, tile_k), lambda i, j: (i, 0, 0, j)),
                pl.BlockSpec((1, ch, d, tile_k), lambda i, j: (i, 0, 0, j)),
            ],
        ),
        compiler_params=pltpu.CompilerParams(
            dimension_semantics=("parallel", "parallel")),
    )(img_re, img_im, csm_re, csm_im, traj)

    ks = (out_re + 1j * out_im)[..., :k]
    return ks.astype(jnp.complex64)


def _reference(image, csm, kspace_traj):
    """Plain-JAX reference: CSE broadcast multiply followed by exact nonuniform DFT."""
    t, d, h, w = image.shape
    ch = csm.shape[1]
    n = h * w
    xs = jnp.arange(h, dtype=jnp.float32) - (h // 2)
    ys = jnp.arange(w, dtype=jnp.float32) - (w // 2)
    gx = jnp.repeat(xs, w)
    gy = jnp.tile(ys, h)
    phase = (gx[None, :, None] * kspace_traj[:, 0][:, None, :]
             + gy[None, :, None] * kspace_traj[:, 1][:, None, :])      # (t, n, K)
    basis = jnp.exp(-1j * phase).astype(jnp.complex64)
    coil = (image[:, None, :, :, :] * csm).reshape(t, ch, d, n)        # CSE broadcast multiply
    ks = jnp.einsum('tcdn,tnk->tcdk', coil, basis) / jnp.sqrt(jnp.float32(n))
    return ks.astype(jnp.complex64)


if __name__ == "__main__":
    t, ch, d, h, w, K = 2, 4, 2, 16, 16, 64

    key = jax.random.PRNGKey(0)
    k1, k2, k3, k4, k5 = jax.random.split(key, 5)
    image = (jax.random.normal(k1, (t, d, h, w), dtype=jnp.float32)
             + 1j * jax.random.normal(k2, (t, d, h, w), dtype=jnp.float32)).astype(jnp.complex64)
    csm = (jax.random.normal(k3, (t, ch, d, h, w), dtype=jnp.float32)
           + 1j * jax.random.normal(k4, (t, ch, d, h, w), dtype=jnp.float32)).astype(jnp.complex64)
    kspace_traj = jax.random.uniform(
        k5, (t, 2, K), minval=-jnp.pi, maxval=jnp.pi, dtype=jnp.float32)

    out = mr_forward_model_static(image, csm, kspace_traj)
    out = jax.block_until_ready(out)

    assert out.shape == (t, ch, d, K) and out.dtype == jnp.complex64

    ref = _reference(image, csm, kspace_traj)
    rel_err = float(jnp.max(jnp.abs(out - ref)) / (jnp.max(jnp.abs(ref)) + 1e-8))
    assert rel_err < 5e-2, f"relative error too large: {rel_err}"

    print("KERNEL_OK")
</pallas_src>

<mosaic_0001>
module attributes {stable_mosaic.version = 11 : i64} {
  func.func @_mr_forward_kernel(%arg0: i32, %arg1: i32, %arg2: memref<1x2x256xf32, #tpu.memory_space<vmem>>, %arg3: memref<1x2x256xf32, #tpu.memory_space<vmem>>, %arg4: memref<1x4x2x256xf32, #tpu.memory_space<vmem>>, %arg5: memref<1x4x2x256xf32, #tpu.memory_space<vmem>>, %arg6: memref<1x2x128xf32, #tpu.memory_space<vmem>>, %arg7: memref<1x4x2x128xf32, #tpu.memory_space<vmem>>, %arg8: memref<1x4x2x128xf32, #tpu.memory_space<vmem>>) attributes {dimension_semantics = [#tpu.dimension_semantics<parallel>, #tpu.dimension_semantics<parallel>], iteration_bounds = array<i64: 2, 1>, scalar_prefetch = 0 : i64, scratch_operands = 0 : i64, tpu.core_type = #tpu.core_type<tc>, window_params = [{transform_indices = @transform_0, window_bounds = array<i64: 1, 2, 256>}, {transform_indices = @transform_1, window_bounds = array<i64: 1, 2, 256>}, {transform_indices = @transform_2, window_bounds = array<i64: 1, 4, 2, 256>}, {transform_indices = @transform_3, window_bounds = array<i64: 1, 4, 2, 256>}, {transform_indices = @transform_4, window_bounds = array<i64: 1, 2, 128>}, {transform_indices = @transform_5, window_bounds = array<i64: 1, 4, 2, 128>}, {transform_indices = @transform_6, window_bounds = array<i64: 1, 4, 2, 128>}]} {
    %c0 = arith.constant 0 : index
    %c0_0 = arith.constant 0 : index
    %c0_1 = arith.constant 0 : index
    %0 = vector.load %arg2[%c0, %c0_0, %c0_1] : memref<1x2x256xf32, #tpu.memory_space<vmem>>, vector<1x2x256xf32>
    %1 = vector.shape_cast %0 : vector<1x2x256xf32> to vector<2x256xf32>
    %c0_2 = arith.constant 0 : index
    %c0_3 = arith.constant 0 : index
    %c0_4 = arith.constant 0 : index
    %2 = vector.load %arg3[%c0_2, %c0_3, %c0_4] : memref<1x2x256xf32, #tpu.memory_space<vmem>>, vector<1x2x256xf32>
    %3 = vector.shape_cast %2 : vector<1x2x256xf32> to vector<2x256xf32>
    %c0_5 = arith.constant 0 : index
    %c0_6 = arith.constant 0 : index
    %c0_7 = arith.constant 0 : index
    %c0_8 = arith.constant 0 : index
    %4 = vector.load %arg4[%c0_5, %c0_6, %c0_7, %c0_8] : memref<1x4x2x256xf32, #tpu.memory_space<vmem>>, vector<1x4x2x256xf32>
    %5 = vector.shape_cast %4 : vector<1x4x2x256xf32> to vector<4x2x256xf32>
    %c0_9 = arith.constant 0 : index
    %c0_10 = arith.constant 0 : index
    %c0_11 = arith.constant 0 : index
    %c0_12 = arith.constant 0 : index
    %6 = vector.load %arg5[%c0_9, %c0_10, %c0_11, %c0_12] : memref<1x4x2x256xf32, #tpu.memory_space<vmem>>, vector<1x4x2x256xf32>
    %7 = vector.shape_cast %6 : vector<1x4x2x256xf32> to vector<4x2x256xf32>
    %8 = vector.shape_cast %1 : vector<2x256xf32> to vector<1x2x256xf32>
    %9 = vector.broadcast %8 : vector<1x2x256xf32> to vector<4x2x256xf32>
    %10 = arith.mulf %9, %5 : vector<4x2x256xf32>
    %11 = vector.shape_cast %3 : vector<2x256xf32> to vector<1x2x256xf32>
    %12 = vector.broadcast %11 : vector<1x2x256xf32> to vector<4x2x256xf32>
    %13 = arith.mulf %12, %7 : vector<4x2x256xf32>
    %14 = arith.subf %10, %13 : vector<4x2x256xf32>
    %15 = vector.shape_cast %1 : vector<2x256xf32> to vector<1x2x256xf32>
    %16 = vector.broadcast %15 : vector<1x2x256xf32> to vector<4x2x256xf32>
    %17 = arith.mulf %16, %7 : vector<4x2x256xf32>
    %18 = vector.shape_cast %3 : vector<2x256xf32> to vector<1x2x256xf32>
    %19 = vector.broadcast %18 : vector<1x2x256xf32> to vector<4x2x256xf32>
    %20 = arith.mulf %19, %5 : vector<4x2x256xf32>
    %21 = arith.addf %17, %20 : vector<4x2x256xf32>
    %22 = vector.shape_cast %14 : vector<4x2x256xf32> to vector<8x256xf32>
    %23 = arith.truncf %22 : vector<8x256xf32> to vector<8x256xbf16>
    %24 = vector.shape_cast %21 : vector<4x2x256xf32> to vector<8x256xf32>
    %25 = arith.truncf %24 : vector<8x256xf32> to vector<8x256xbf16>
    %c0_13 = arith.constant 0 : index
    %c0_14 = arith.constant 0 : index
    %c0_15 = arith.constant 0 : index
    %26 = vector.load %arg6[%c0_13, %c0_14, %c0_15] : memref<1x2x128xf32, #tpu.memory_space<vmem>>, vector<1x2x128xf32>
    %27 = vector.shape_cast %26 : vector<1x2x128xf32> to vector<2x128xf32>
    %28 = vector.extract_strided_slice %27 {offsets = [0, 0], sizes = [1, 128], strides = [1, 1]} : vector<2x128xf32> to vector<1x128xf32>
    %29 = vector.extract_strided_slice %27 {offsets = [1, 0], sizes = [1, 128], strides = [1, 1]} : vector<2x128xf32> to vector<1x128xf32>
    %30 = tpu.iota {dimensions = array<i32: 0>} : vector<16x128xi32>
    %31 = arith.sitofp %30 : vector<16x128xi32> to vector<16x128xf32>
    %cst = arith.constant 8.000000e+00 : f32
    %32 = vector.broadcast %cst : f32 to vector<16x128xf32>
    %33 = arith.subf %31, %32 : vector<16x128xf32>
    %34 = tpu.iota {dimensions = array<i32: 0>} : vector<16x128xi32>
    %35 = arith.sitofp %34 : vector<16x128xi32> to vector<16x128xf32>
    %cst_16 = arith.constant 8.000000e+00 : f32
    %36 = vector.broadcast %cst_16 : f32 to vector<16x128xf32>
    %37 = arith.subf %35, %36 : vector<16x128xf32>
    %38 = vector.broadcast %28 : vector<1x128xf32> to vector<16x128xf32>
    %39 = arith.mulf %33, %38 : vector<16x128xf32>
    %40 = vector.broadcast %29 : vector<1x128xf32> to vector<16x128xf32>
    %41 = arith.mulf %37, %40 : vector<16x128xf32>
    %42 = math.cos %39 : vector<16x128xf32>
    %43 = math.sin %39 : vector<16x128xf32>
    %44 = math.cos %41 : vector<16x128xf32>
    %45 = math.sin %41 : vector<16x128xf32>
    %46 = vector.shape_cast %42 : vector<16x128xf32> to vector<16x1x128xf32>
    %47 = vector.shape_cast %44 : vector<16x128xf32> to vector<1x16x128xf32>
    %48 = vector.broadcast %46 : vector<16x1x128xf32> to vector<16x16x128xf32>
    %49 = vector.broadcast %47 : vector<1x16x128xf32> to vector<16x16x128xf32>
    %50 = arith.mulf %48, %49 : vector<16x16x128xf32>
    %51 = vector.shape_cast %43 : vector<16x128xf32> to vector<16x1x128xf32>
    %52 = vector.shape_cast %45 : vector<16x128xf32> to vector<1x16x128xf32>
    %53 = vector.broadcast %51 : vector<16x1x128xf32> to vector<16x16x128xf32>
    %54 = vector.broadcast %52 : vector<1x16x128xf32> to vector<16x16x128xf32>
    %55 = arith.mulf %53, %54 : vector<16x16x128xf32>
    %56 = arith.subf %50, %55 : vector<16x16x128xf32>
    %57 = vector.shape_cast %56 : vector<16x16x128xf32> to vector<256x128xf32>
    %58 = vector.shape_cast %43 : vector<16x128xf32> to vector<16x1x128xf32>
    %59 = vector.shape_cast %44 : vector<16x128xf32> to vector<1x16x128xf32>
    %60 = vector.broadcast %58 : vector<16x1x128xf32> to vector<16x16x128xf32>
    %61 = vector.broadcast %59 : vector<1x16x128xf32> to vector<16x16x128xf32>
    %62 = arith.mulf %60, %61 : vector<16x16x128xf32>
    %63 = vector.shape_cast %42 : vector<16x128xf32> to vector<16x1x128xf32>
    %64 = vector.shape_cast %45 : vector<16x128xf32> to vector<1x16x128xf32>
    %65 = vector.broadcast %63 : vector<16x1x128xf32> to vector<16x16x128xf32>
    %66 = vector.broadcast %64 : vector<1x16x128xf32> to vector<16x16x128xf32>
    %67 = arith.mulf %65, %66 : vector<16x16x128xf32>
    %68 = arith.addf %62, %67 : vector<16x16x128xf32>
    %69 = vector.shape_cast %68 : vector<16x16x128xf32> to vector<256x128xf32>
    %cst_17 = arith.constant 0.000000e+00 : f32
    %70 = vector.broadcast %cst_17 : f32 to vector<256x128xf32>
    %71 = arith.subf %70, %69 : vector<256x128xf32>
    %72 = arith.truncf %57 : vector<256x128xf32> to vector<256x128xbf16>
    %73 = arith.truncf %71 : vector<256x128xf32> to vector<256x128xbf16>
    %74 = tpu.concatenate %72, %73 in 1 : vector<256x128xbf16>, vector<256x128xbf16> -> vector<256x256xbf16>
    %cst_18 = arith.constant dense<0.000000e+00> : vector<8x256xf32>
    %75 = tpu.matmul %23, %74, %cst_18 {dimension_numbers = #tpu.dot_dimension_numbers<[1], [0], [0], [1], [0, 0, 1, 1], [], []>} : vector<8x256xbf16>, vector<256x256xbf16>, vector<8x256xf32> -> vector<8x256xf32>
    %cst_19 = arith.constant dense<0.000000e+00> : vector<8x256xf32>
    %76 = tpu.matmul %25, %74, %cst_19 {dimension_numbers = #tpu.dot_dimension_numbers<[1], [0], [0], [1], [0, 0, 1, 1], [], []>} : vector<8x256xbf16>, vector<256x256xbf16>, vector<8x256xf32> -> vector<8x256xf32>
    %77 = vector.extract_strided_slice %75 {offsets = [0, 0], sizes = [8, 128], strides = [1, 1]} : vector<8x256xf32> to vector<8x128xf32>
    %78 = vector.extract_strided_slice %76 {offsets = [0, 128], sizes = [8, 128], strides = [1, 1]} : vector<8x256xf32> to vector<8x128xf32>
    %79 = arith.subf %77, %78 : vector<8x128xf32>
    %cst_20 = arith.constant 6.250000e-02 : f32
    %80 = vector.broadcast %cst_20 : f32 to vector<8x128xf32>
    %81 = arith.mulf %79, %80 : vector<8x128xf32>
    %82 = vector.extract_strided_slice %75 {offsets = [0, 128], sizes = [8, 128], strides = [1, 1]} : vector<8x256xf32> to vector<8x128xf32>
    %83 = vector.extract_strided_slice %76 {offsets = [0, 0], sizes = [8, 128], strides = [1, 1]} : vector<8x256xf32> to vector<8x128xf32>
    %84 = arith.addf %82, %83 : vector<8x128xf32>
    %cst_21 = arith.constant 6.250000e-02 : f32
    %85 = vector.broadcast %cst_21 : f32 to vector<8x128xf32>
    %86 = arith.mulf %84, %85 : vector<8x128xf32>
    %87 = vector.shape_cast %81 : vector<8x128xf32> to vector<4x2x128xf32>
    %c0_22 = arith.constant 0 : index
    %c0_23 = arith.constant 0 : index
    %c0_24 = arith.constant 0 : index
    %c0_25 = arith.constant 0 : index
    %88 = vector.load %arg7[%c0_22, %c0_23, %c0_24, %c0_25] : memref<1x4x2x128xf32, #tpu.memory_space<vmem>>, vector<1x4x2x128xf32>
    %89 = vector.shape_cast %88 : vector<1x4x2x128xf32> to vector<4x2x128xf32>
    %90 = vector.shape_cast %87 : vector<4x2x128xf32> to vector<1x4x2x128xf32>
    tpu.vector_store %arg7[%c0_22, %c0_23, %c0_24, %c0_25], %90 {strides = array<i32>} : memref<1x4x2x128xf32, #tpu.memory_space<vmem>>, vector<1x4x2x128xf32>,
    %91 = vector.shape_cast %86 : vector<8x128xf32> to vector<4x2x128xf32>
    %c0_26 = arith.constant 0 : index
    %c0_27 = arith.constant 0 : index
    %c0_28 = arith.constant 0 : index
    %c0_29 = arith.constant 0 : index
    %92 = vector.load %arg8[%c0_26, %c0_27, %c0_28, %c0_29] : memref<1x4x2x128xf32, #tpu.memory_space<vmem>>, vector<1x4x2x128xf32>
    %93 = vector.shape_cast %92 : vector<1x4x2x128xf32> to vector<4x2x128xf32>
    %94 = vector.shape_cast %91 : vector<4x2x128xf32> to vector<1x4x2x128xf32>
    tpu.vector_store %arg8[%c0_26, %c0_27, %c0_28, %c0_29], %94 {strides = array<i32>} : memref<1x4x2x128xf32, #tpu.memory_space<vmem>>, vector<1x4x2x128xf32>,
    return
  }
  func.func @transform_0(%arg0: i32, %arg1: i32) -> (i32, i32, i32) {
    %c0_i32 = arith.constant 0 : i32
    %c0_i32_0 = arith.constant 0 : i32
    %c0_i32_1 = arith.constant 0 : i32
    return %arg0, %c0_i32, %c0_i32_0 : i32, i32, i32
  }
  func.func @transform_1(%arg0: i32, %arg1: i32) -> (i32, i32, i32) {
    %c0_i32 = arith.constant 0 : i32
    %c0_i32_0 = arith.constant 0 : i32
    %c0_i32_1 = arith.constant 0 : i32
    return %arg0, %c0_i32, %c0_i32_0 : i32, i32, i32
  }
  func.func @transform_2(%arg0: i32, %arg1: i32) -> (i32, i32, i32, i32) {
    %c0_i32 = arith.constant 0 : i32
    %c0_i32_0 = arith.constant 0 : i32
    %c0_i32_1 = arith.constant 0 : i32
    %c0_i32_2 = arith.constant 0 : i32
    return %arg0, %c0_i32, %c0_i32_0, %c0_i32_1 : i32, i32, i32, i32
  }
  func.func @transform_3(%arg0: i32, %arg1: i32) -> (i32, i32, i32, i32) {
    %c0_i32 = arith.constant 0 : i32
    %c0_i32_0 = arith.constant 0 : i32
    %c0_i32_1 = arith.constant 0 : i32
    %c0_i32_2 = arith.constant 0 : i32
    return %arg0, %c0_i32, %c0_i32_0, %c0_i32_1 : i32, i32, i32, i32
  }
  func.func @transform_4(%arg0: i32, %arg1: i32) -> (i32, i32, i32) {
    %c0_i32 = arith.constant 0 : i32
    %c0_i32_0 = arith.constant 0 : i32
    return %arg0, %c0_i32, %arg1 : i32, i32, i32
  }
  func.func @transform_5(%arg0: i32, %arg1: i32) -> (i32, i32, i32, i32) {
    %c0_i32 = arith.constant 0 : i32
    %c0_i32_0 = arith.constant 0 : i32
    %c0_i32_1 = arith.constant 0 : i32
    return %arg0, %c0_i32, %c0_i32_0, %arg1 : i32, i32, i32, i32
  }
  func.func @transform_6(%arg0: i32, %arg1: i32) -> (i32, i32, i32, i32) {
    %c0_i32 = arith.constant 0 : i32
    %c0_i32_0 = arith.constant 0 : i32
    %c0_i32_1 = arith.constant 0 : i32
    return %arg0, %c0_i32, %c0_i32_0, %arg1 : i32, i32, i32, i32
  }
}

</mosaic_0001>

<llo_original>
// kernel: tpu_custom_call.1
$region0: #{tpu_custom_call.1}
  #allocation0 [shape = 'u32[]', space=smem, size = 0x4, offset = 0x4, fixed_abs, tag = 'smem constant byte address 0x4 - core index']
  #allocation1 [shape = 'u32[144,128]{1,0:T(1,128)}', space=vmem, size = 0x12000, scoped, tag = 'internal scratch']
  %s0 = inlined_call_operand.hbm [shape: f32[2,2,256], index: 0, kind: input, shape index: {}]
  %s1 = inlined_call_operand.hbm [shape: f32[2,2,256], index: 1, kind: input, shape index: {}]
  %s2 = inlined_call_operand.hbm [shape: f32[2,4,2,256], index: 2, kind: input, shape index: {}]
  %s3 = inlined_call_operand.hbm [shape: f32[2,4,2,256], index: 3, kind: input, shape index: {}]
  %s4 = inlined_call_operand.vmem [shape: f32[2,2,128], index: 4, kind: input, shape index: {}]
  %s5 = inlined_call_operand.hbm [shape: f32[2,4,2,128], index: 5, kind: output, shape index: {0}]
  %s6 = inlined_call_operand.hbm [shape: f32[2,4,2,128], index: 6, kind: output, shape index: {1}]
  %7 = xla_tuple %s5, %s6
  %s8 = sld [smem:[#allocation0]]
  $region77: #{tpu_custom_call.1} parent=0
    _
  %s10 = ssub.s32 1, %s8
  %s11 = scalar_select 0, %s10, %s8
  $region1: #{tpu_custom_call.1} parent=0
    #allocation2 [shape = 'u8[4096]{0}', space=vmem, size = 0x1000, scoped, tag = 'input window, operand 0']
    #allocation3 [shape = 's32[2]{0}', space=sflag, size = 0x8, scoped, tag = 'scoped memory for tpu_custom_call.1']
    #allocation4 [shape = 's32[2]{0}', space=sflag, size = 0x8, scoped, tag = 'scoped memory for tpu_custom_call.1']
    #allocation5 [shape = 'u8[4096]{0}', space=vmem, size = 0x1000, scoped, tag = 'input window, operand 1']
    #allocation6 [shape = 's32[2]{0}', space=sflag, size = 0x8, scoped, tag = 'scoped memory for tpu_custom_call.1']
    #allocation7 [shape = 'u8[16384]{0}', space=vmem, size = 0x4000, scoped, tag = 'input window, operand 2']
    #allocation8 [shape = 'u8[16384]{0}', space=vmem, size = 0x4000, scoped, tag = 'input window, operand 3']
    #allocation9 [shape = 's32[2]{0}', space=sflag, size = 0x8, scoped, tag = 'scoped memory for tpu_custom_call.1']
    #allocation10 [shape = 'u8[8192]{0}', space=vmem, size = 0x2000, scoped, tag = 'output window, operand 0']
    #allocation11 [shape = 'u8[8192]{0}', space=vmem, size = 0x2000, scoped, tag = 'output window, operand 1']
    #allocation12 [shape = 's32[2]{0}', space=sflag, size = 0x8, scoped, tag = 'scoped memory for tpu_custom_call.1']
    %12 = vsyncpa [#allocation3], 0
    %s13 = scalar_lea.sflag [#allocation3], 1
    %14 = vsyncpa %s13, 0
    %15 = vsyncpa [#allocation6], 0
    %s16 = scalar_lea.sflag [#allocation6], 1
    %17 = vsyncpa %s16, 0
    %18 = vsyncpa [#allocation9], 0
    %s19 = scalar_lea.sflag [#allocation9], 1
    %20 = vsyncpa %s19, 0
    %21 = vsyncpa [#allocation4], 0
    %s22 = scalar_lea.sflag [#allocation4], 1
    %23 = vsyncpa %s22, 0
    %24 = vsyncpa [#allocation12], 0
    %s25 = scalar_lea.sflag [#allocation12], 1
    %26 = vsyncpa %s25, 0
    loop: start=0, step=1, limit=4
    $region2: #{tpu_custom_call.1} parent=1 // loop_pre_header
      _
    $region3: #{tpu_custom_call.1} parent=1 // loop_header
      %s28 = sphi 0, %s32
      %p29 = scmp.ge.s32.totalorder %s28, 4
      %s35 = sphi 0, %s47
      %s36 = sphi 0, %s43
      %s37 = sphi 0, %s35
      %s38 = sphi 0, %s36
      %s39 = sphi 0, %s37
      %s40 = sphi 0, %s38
      %s50 = sphi 0, %s52
      %s53 = sphi 0, %s50
      %s54 = sphi 0, %s53
      %s70 = sphi 0, %s54
      %s76 = sphi 0, %s78
      %s79 = sphi 0, %s76
      %s80 = sphi 0, %s79
      %s96 = sphi 0, %s80
      %s102 = sphi 0, %s104
      %s105 = sphi 0, %s102
      %s106 = sphi 0, %s105
      %s122 = sphi 0, %s106
      %s128 = sphi 0, %s130
      %s131 = sphi 0, %s128
      %s132 = sphi 0, %s131
      %s148 = sphi 0, %s132
      %s156 = sphi 0, %s158
      %s159 = sphi 0, %s156
      %s160 = sphi 0, %s159
      %s176 = sphi 0, %s160
      %s184 = sphi 0, %s186
      %s187 = sphi 0, %s184
      %s188 = sphi 0, %s187
      %s204 = sphi 0, %s188
      %s212 = sphi 0, %s214
      %s215 = sphi 0, %s212
      %s216 = sphi 0, %s215
      %s232 = sphi 0, %s216
    $region4: #{tpu_custom_call.1} parent=1 // loop_header_branch
      %31 = sbr.rel (%p29) target = $region8
    $region5: #{tpu_custom_call.1} parent=1 // loop_body
      %s33 = ssub.s32 %s28, 1
      %s34 = ssub.s32 %s28, 2
      %s41 = sadd.s32 1, %s36
      %p42 = scmp.ge.s32.totalorder %s41, 1
      %s43 = scalar_select %p42, 0, %s41
      %s44 = sadd.s32 1, %s35
      %s45 = scalar_select %p42, %s44, %s35
      %p46 = scmp.ge.s32.totalorder %s45, 2
      %s47 = scalar_select %p46, 0, %s45
      %s48 = ssub.s32 %s35, %s47
      %p49 = scmp.eq.s32.totalorder %s48, 0
      %s51 = sadd.s32 %s50, 1
      %s52 = scalar_select %p49, %s50, %s51
      %p55 = pneg %p49
      %p56 = scmp.eq.s32.totalorder %s28, 1
      %p57 = por %p55, %p56
      %p58 = scmp.ne.s32.totalorder %s50, %s53
      %p59 = scmp.eq.s32.totalorder %s28, 0
      %p60 = por %p58, %p59
      %p61 = scmp.ne.s32.totalorder %s50, %s53
      %p62 = scmp.eq.s32.totalorder %s33, 1
      %p63 = por %p61, %p62
      %p64 = scmp.ne.s32.totalorder %s53, %s54
      %p65 = scmp.eq.s32.totalorder %s33, 0
      %p66 = por %p64, %p65
      %p67 = scmp.ne.s32.totalorder %s53, %s54
      %p68 = scmp.eq.s32.totalorder %s34, 1
      %p69 = por %p67, %p68
      %p71 = scmp.ne.s32.totalorder %s54, %s70
      %p72 = scmp.eq.s32.totalorder %s34, 0
      %p73 = por %p71, %p72
      %s74 = ssub.s32 %s35, %s47
      %p75 = scmp.eq.s32.totalorder %s74, 0
      %s77 = sadd.s32 %s76, 1
      %s78 = scalar_select %p75, %s76, %s77
      %p81 = pneg %p75
      %p82 = scmp.eq.s32.totalorder %s28, 1
      %p83 = por %p81, %p82
      %p84 = scmp.ne.s32.totalorder %s76, %s79
      %p85 = scmp.eq.s32.totalorder %s28, 0
      %p86 = por %p84, %p85
      %p87 = scmp.ne.s32.totalorder %s76, %s79
      %p88 = scmp.eq.s32.totalorder %s33, 1
      %p89 = por %p87, %p88
      %p90 = scmp.ne.s32.totalorder %s79, %s80
      %p91 = scmp.eq.s32.totalorder %s33, 0
      %p92 = por %p90, %p91
      %p93 = scmp.ne.s32.totalorder %s79, %s80
      %p94 = scmp.eq.s32.totalorder %s34, 1
      %p95 = por %p93, %p94
      %p97 = scmp.ne.s32.totalorder %s80, %s96
      %p98 = scmp.eq.s32.totalorder %s34, 0
      %p99 = por %p97, %p98
      %s100 = ssub.s32 %s35, %s47
      %p101 = scmp.eq.s32.totalorder %s100, 0
      %s103 = sadd.s32 %s102, 1
      %s104 = scalar_select %p101, %s102, %s103
      %p107 = pneg %p101
      %p108 = scmp.eq.s32.totalorder %s28, 1
      %p109 = por %p107, %p108
      %p110 = scmp.ne.s32.totalorder %s102, %s105
      %p111 = scmp.eq.s32.totalorder %s28, 0
      %p112 = por %p110, %p111
      %p113 = scmp.ne.s32.totalorder %s102, %s105
      %p114 = scmp.eq.s32.totalorder %s33, 1
      %p115 = por %p113, %p114
      %p116 = scmp.ne.s32.totalorder %s105, %s106
      %p117 = scmp.eq.s32.totalorder %s33, 0
      %p118 = por %p116, %p117
      %p119 = scmp.ne.s32.totalorder %s105, %s106
      %p120 = scmp.eq.s32.totalorder %s34, 1
      %p121 = por %p119, %p120
      %p123 = scmp.ne.s32.totalorder %s106, %s122
      %p124 = scmp.eq.s32.totalorder %s34, 0
      %p125 = por %p123, %p124
      %s126 = ssub.s32 %s35, %s47
      %p127 = scmp.eq.s32.totalorder %s126, 0
      %s129 = sadd.s32 %s128, 1
      %s130 = scalar_select %p127, %s128, %s129
      %p133 = pneg %p127
      %p134 = scmp.eq.s32.totalorder %s28, 1
      %p135 = por %p133, %p134
      %p136 = scmp.ne.s32.totalorder %s128, %s131
      %p137 = scmp.eq.s32.totalorder %s28, 0
      %p138 = por %p136, %p137
      %p139 = scmp.ne.s32.totalorder %s128, %s131
      %p140 = scmp.eq.s32.totalorder %s33, 1
      %p141 = por %p139, %p140
      %p142 = scmp.ne.s32.totalorder %s131, %s132
      %p143 = scmp.eq.s32.totalorder %s33, 0
      %p144 = por %p142, %p143
      %p145 = scmp.ne.s32.totalorder %s131, %s132
      %p146 = scmp.eq.s32.totalorder %s34, 1
      %p147 = por %p145, %p146
      %p149 = scmp.ne.s32.totalorder %s132, %s148
      %p150 = scmp.eq.s32.totalorder %s34, 0
      %p151 = por %p149, %p150
      %s152 = ssub.s32 %s35, %s47
      %s153 = ssub.s32 %s36, %s43
      %s154 = sor.u32 %s152, %s153
      %p155 = scmp.eq.s32.totalorder %s154, 0
      %s157 = sadd.s32 %s156, 1
      %s158 = scalar_select %p155, %s156, %s157
      %p161 = pneg %p155
      %p162 = scmp.eq.s32.totalorder %s28, 1
      %p163 = por %p161, %p162
      %p164 = scmp.ne.s32.totalorder %s156, %s159
      %p165 = scmp.eq.s32.totalorder %s28, 0
      %p166 = por %p164, %p165
      %p167 = scmp.ne.s32.totalorder %s156, %s159
      %p168 = scmp.eq.s32.totalorder %s33, 1
      %p169 = por %p167, %p168
      %p170 = scmp.ne.s32.totalorder %s159, %s160
      %p171 = scmp.eq.s32.totalorder %s33, 0
      %p172 = por %p170, %p171
      %p173 = scmp.ne.s32.totalorder %s159, %s160
      %p174 = scmp.eq.s32.totalorder %s34, 1
      %p175 = por %p173, %p174
      %p177 = scmp.ne.s32.totalorder %s160, %s176
      %p178 = scmp.eq.s32.totalorder %s34, 0
      %p179 = por %p177, %p178
      %s180 = ssub.s32 %s35, %s47
      %s181 = ssub.s32 %s36, %s43
      %s182 = sor.u32 %s180, %s181
      %p183 = scmp.eq.s32.totalorder %s182, 0
      %s185 = sadd.s32 %s184, 1
      %s186 = scalar_select %p183, %s184, %s185
      %p189 = pneg %p183
      %p190 = scmp.eq.s32.totalorder %s28, 1
      %p191 = por %p189, %p190
      %p192 = scmp.ne.s32.totalorder %s184, %s187
      %p193 = scmp.eq.s32.totalorder %s28, 0
      %p194 = por %p192, %p193
      %p195 = scmp.ne.s32.totalorder %s184, %s187
      %p196 = scmp.eq.s32.totalorder %s33, 1
      %p197 = por %p195, %p196
      %p198 = scmp.ne.s32.totalorder %s187, %s188
      %p199 = scmp.eq.s32.totalorder %s33, 0
      %p200 = por %p198, %p199
      %p201 = scmp.ne.s32.totalorder %s187, %s188
      %p202 = scmp.eq.s32.totalorder %s34, 1
      %p203 = por %p201, %p202
      %p205 = scmp.ne.s32.totalorder %s188, %s204
      %p206 = scmp.eq.s32.totalorder %s34, 0
      %p207 = por %p205, %p206
      %s208 = ssub.s32 %s35, %s47
      %s209 = ssub.s32 %s36, %s43
      %s210 = sor.u32 %s208, %s209
      %p211 = scmp.eq.s32.totalorder %s210, 0
      %s213 = sadd.s32 %s212, 1
      %s214 = scalar_select %p211, %s212, %s213
      %p217 = pneg %p211
      %p218 = scmp.eq.s32.totalorder %s28, 1
      %p219 = por %p217, %p218
      %p220 = scmp.ne.s32.totalorder %s212, %s215
      %p221 = scmp.eq.s32.totalorder %s28, 0
      %p222 = por %p220, %p221
      %p223 = scmp.ne.s32.totalorder %s212, %s215
      %p224 = scmp.eq.s32.totalorder %s33, 1
      %p225 = por %p223, %p224
      %p226 = scmp.ne.s32.totalorder %s215, %s216
      %p227 = scmp.eq.s32.totalorder %s33, 0
      %p228 = por %p226, %p227
      %p229 = scmp.ne.s32.totalorder %s215, %s216
      %p230 = scmp.eq.s32.totalorder %s34, 1
      %p231 = por %p229, %p230
      %p233 = scmp.ne.s32.totalorder %s216, %s232
      %p234 = scmp.eq.s32.totalorder %s34, 0
      %p235 = por %p233, %p234
      %p236 = scmp.le.s32.totalorder 1, %s28
      %p237 = scmp.lt.s32.totalorder %s28, 3
      %p238 = pnand %p236, %p237
      %p239 = pneg %p238
      // Predicated region
      $region9: #{tpu_custom_call.1} parent=5 // pred_check
        _
      $region10: #{tpu_custom_call.1} parent=5 // pred_check_branch
        %241 = sbr.rel (%p238) target = $region12
      $region11: #{tpu_custom_call.1} parent=5 // pred_region
        %s242 = ssub.s32 %s28, 1
      $region12: #{tpu_custom_call.1} parent=5 // pred_fallthru
        _
      %p243 = scmp.lt.s32.totalorder %s28, 2
      // Predicated region
      $region13: #{tpu_custom_call.1} parent=5 // pred_check
        %p244 = pneg %p243
      $region14: #{tpu_custom_call.1} parent=5 // pred_check_branch
        %246 = sbr.rel (%p244) target = $region16
      $region15: #{tpu_custom_call.1} parent=5 // pred_region
        // Predicated region
        $region17: #{tpu_custom_call.1} parent=15 // pred_check
          %p247 = pneg %p60
        $region18: #{tpu_custom_call.1} parent=15 // pred_check_branch
          %249 = sbr.rel (%p247) target = $region20
        $region19: #{tpu_custom_call.1} parent=15 // pred_region
          %s250 = sand.u32 %s50, 1
          %s251 = scalar_lea.sflag [#allocation3], %s250
          %s252 = sand.u32 %s50, 1
          %s253 = smul.addr %s252, 4
          %s254 = scalar_lea.vmem [#allocation2], %s253
          %s256 = ssub.s32 64, 64
          %257 = vsyncadd %s251, %s256
          %s258 = smul.addr %s35, 2
          %s259 = smul.addr %s258, 32
          %s260 = scalar_lea.hbm %s0, %s259
          %s262 = sshll.u32 %s254, 4
          %s263 = int_to_ptr.vmem [resolvable:$true] %s262
          %265 = dma.hbm_to_vmem [thread:$0]  %s260, 64, %s263, %s251
        $region20: #{tpu_custom_call.1} parent=15 // pred_fallthru
          _
        // Predicated region
        $region21: #{tpu_custom_call.1} parent=15 // pred_check
          %p266 = pneg %p86
        $region22: #{tpu_custom_call.1} parent=15 // pred_check_branch
          %268 = sbr.rel (%p266) target = $region24
        $region23: #{tpu_custom_call.1} parent=15 // pred_region
          %s269 = sand.u32 %s28, 1
          %s270 = scalar_lea.sflag [#allocation6], %s269
          %s271 = sand.u32 %s76, 1
          %s272 = smul.addr %s271, 4
          %s273 = scalar_lea.vmem [#allocation5], %s272
          %s275 = ssub.s32 64, 64
          %276 = vsyncadd %s270, %s275
          %s277 = smul.addr %s35, 2
          %s278 = smul.addr %s277, 32
          %s279 = scalar_lea.hbm %s1, %s278
          %s281 = sshll.u32 %s273, 4
          %s282 = int_to_ptr.vmem [resolvable:$true] %s281
          %284 = dma.hbm_to_vmem [thread:$0]  %s279, 64, %s282, %s270
        $region24: #{tpu_custom_call.1} parent=15 // pred_fallthru
          _
        // Predicated region
        $region25: #{tpu_custom_call.1} parent=15 // pred_check
          %p285 = pneg %p112
        $region26: #{tpu_custom_call.1} parent=15 // pred_check_branch
          %287 = sbr.rel (%p285) target = $region28
        $region27: #{tpu_custom_call.1} parent=15 // pred_region
          %s288 = sand.u32 %s28, 1
          %s289 = scalar_lea.sflag [#allocation6], %s288
          %s290 = sand.u32 %s102, 1
          %s291 = smul.addr %s290, 16
          %s292 = scalar_lea.vmem [#allocation7], %s291
          %s294 = ssub.s32 256, 256
          %295 = vsyncadd %s289, %s294
          %s296 = smul.addr %s35, 8
          %s297 = smul.addr %s296, 32
          %s298 = scalar_lea.hbm %s2, %s297
          %s299 = sshll.u32 %s292, 4
          %s300 = int_to_ptr.vmem [resolvable:$true] %s299
          %305 = dma.hbm_to_vmem [thread:$0]  %s298, 256, %s300, %s289, 64, 64, 4
        $region28: #{tpu_custom_call.1} parent=15 // pred_fallthru
          _
        // Predicated region
        $region29: #{tpu_custom_call.1} parent=15 // pred_check
          %p306 = pneg %p138
        $region30: #{tpu_custom_call.1} parent=15 // pred_check_branch
          %308 = sbr.rel (%p306) target = $region32
        $region31: #{tpu_custom_call.1} parent=15 // pred_region
          %s309 = sand.u32 %s128, 1
          %s310 = scalar_lea.sflag [#allocation9], %s309
          %s311 = sand.u32 %s128, 1
          %s312 = smul.addr %s311, 16
          %s313 = scalar_lea.vmem [#allocation8], %s312
          %s315 = ssub.s32 256, 256
          %316 = vsyncadd %s310, %s315
          %s317 = smul.addr %s35, 8
          %s318 = smul.addr %s317, 32
          %s319 = scalar_lea.hbm %s3, %s318
          %s320 = sshll.u32 %s313, 4
          %s321 = int_to_ptr.vmem [resolvable:$true] %s320
          %326 = dma.hbm_to_vmem [thread:$0]  %s319, 256, %s321, %s310, 64, 64, 4
        $region32: #{tpu_custom_call.1} parent=15 // pred_fallthru
          _
        // Predicated region
        $region33: #{tpu_custom_call.1} parent=15 // pred_check
          %p327 = pneg %p166
        $region34: #{tpu_custom_call.1} parent=15 // pred_check_branch
          %329 = sbr.rel (%p327) target = $region36
        $region35: #{tpu_custom_call.1} parent=15 // pred_region
          %p330 = scmp.lt.s32.totalorder %s35, 1
          %s331 = scalar_select %p330, %s35, 1
          %p332 = scmp.lt.s32.totalorder %s36, 0
          %s333 = scalar_select %p332, %s36, 0
          %s334 = sadd.s32 %s333, %s331
          %s335 = smul.addr %s334, 2
          %s336 = scalar_lea.vmem %s4, %s335
        $region36: #{tpu_custom_call.1} parent=15 // pred_fallthru
          _
      $region16: #{tpu_custom_call.1} parent=5 // pred_fallthru
        _
      %p337 = scmp.le.s32.totalorder 1, %s28
      %p338 = scmp.lt.s32.totalorder %s28, 3
      %p339 = pnand %p337, %p338
      %p340 = pneg %p339
      // Predicated region
      $region37: #{tpu_custom_call.1} parent=5 // pred_check
        _
      $region38: #{tpu_custom_call.1} parent=5 // pred_check_branch
        %342 = sbr.rel (%p339) target = $region40
      $region39: #{tpu_custom_call.1} parent=5 // pred_region
        %s343 = ssub.s32 %s28, 1
        %s344 = sand.u32 %s53, 1
        %s345 = scalar_lea.sflag [#allocation3], %s344
        %s346 = sand.u32 %s53, 1
        %s347 = smul.addr %s346, 4
        %s348 = scalar_lea.vmem [#allocation2], %s347
        // Predicated region
        $region41: #{tpu_custom_call.1} parent=39 // pred_check
          %p349 = pneg %p66
        $region42: #{tpu_custom_call.1} parent=39 // pred_check_branch
          %351 = sbr.rel (%p349) target = $region44
        $region43: #{tpu_custom_call.1} parent=39 // pred_region
          %352 = dma.done %s345, 64
        $region44: #{tpu_custom_call.1} parent=39 // pred_fallthru
          _
        %s353 = sand.u32 %s33, 1
        %s354 = scalar_lea.sflag [#allocation6], %s353
        %s355 = sand.u32 %s79, 1
        %s356 = smul.addr %s355, 4
        %s357 = scalar_lea.vmem [#allocation5], %s356
        // Predicated region
        $region45: #{tpu_custom_call.1} parent=39 // pred_check
          %p358 = pneg %p92
        $region46: #{tpu_custom_call.1} parent=39 // pred_check_branch
          %360 = sbr.rel (%p358) target = $region48
        $region47: #{tpu_custom_call.1} parent=39 // pred_region
          %361 = dma.done %s354, 64
        $region48: #{tpu_custom_call.1} parent=39 // pred_fallthru
          _
        %s362 = sand.u32 %s33, 1
        %s363 = scalar_lea.sflag [#allocation6], %s362
        %s364 = sand.u32 %s105, 1
        %s365 = smul.addr %s364, 16
        %s366 = scalar_lea.vmem [#allocation7], %s365
        // Predicated region
        $region49: #{tpu_custom_call.1} parent=39 // pred_check
          %p367 = pneg %p118
        $region50: #{tpu_custom_call.1} parent=39 // pred_check_branch
          %369 = sbr.rel (%p367) target = $region52
        $region51: #{tpu_custom_call.1} parent=39 // pred_region
          %370 = dma.done %s363, 256
        $region52: #{tpu_custom_call.1} parent=39 // pred_fallthru
          _
        %s371 = sand.u32 %s131, 1
        %s372 = scalar_lea.sflag [#allocation9], %s371
        %s373 = sand.u32 %s131, 1
        %s374 = smul.addr %s373, 16
        %s375 = scalar_lea.vmem [#allocation8], %s374
        // Predicated region
        $region53: #{tpu_custom_call.1} parent=39 // pred_check
          %p376 = pneg %p144
        $region54: #{tpu_custom_call.1} parent=39 // pred_check_branch
          %378 = sbr.rel (%p376) target = $region56
        $region55: #{tpu_custom_call.1} parent=39 // pred_region
          %379 = dma.done %s372, 256
        $region56: #{tpu_custom_call.1} parent=39 // pred_fallthru
          _
        %s380 = sand.u32 %s53, 1
        %s381 = scalar_lea.sflag [#allocation3], %s380
        %s382 = sand.u32 %s53, 1
        %s383 = smul.addr %s382, 4
        %s384 = scalar_lea.vmem [#allocation2], %s383
        %p385 = pneg %p66
        %p386 = pneg %p63
        %s387 = sand.u32 %s33, 1
        %s388 = scalar_lea.sflag [#allocation6], %s387
        %s389 = sand.u32 %s79, 1
        %s390 = smul.addr %s389, 4
        %s391 = scalar_lea.vmem [#allocation5], %s390
        %p392 = pneg %p92
        %p393 = pneg %p89
        %s394 = sand.u32 %s33, 1
        %s395 = scalar_lea.sflag [#allocation6], %s394
        %s396 = sand.u32 %s105, 1
        %s397 = smul.addr %s396, 16
        %s398 = scalar_lea.vmem [#allocation7], %s397
        %p399 = pneg %p118
        %p400 = pneg %p115
        %s401 = sand.u32 %s131, 1
        %s402 = scalar_lea.sflag [#allocation9], %s401
        %s403 = sand.u32 %s131, 1
        %s404 = smul.addr %s403, 16
        %s405 = scalar_lea.vmem [#allocation8], %s404
        %p406 = pneg %p144
        %p407 = pneg %p141
        %p408 = scmp.lt.s32.totalorder %s37, 1
        %s409 = scalar_select %p408, %s37, 1
        %p410 = scmp.lt.s32.totalorder %s38, 0
        %s411 = scalar_select %p410, %s38, 0
        %s412 = sadd.s32 %s411, %s409
        %s413 = smul.addr %s412, 2
        %s414 = scalar_lea.vmem %s4, %s413
        %p415 = pneg %p172
        %p416 = pneg %p169
        %p417 = pneg %p200
        %p418 = pneg %p197
        %s419 = sand.u32 %s187, 1
        %s420 = scalar_lea.sflag [#allocation4], %s419
        %s421 = sand.u32 %s187, 1
        %s422 = smul.addr %s421, 8
        %s423 = scalar_lea.vmem [#allocation10], %s422
        %p424 = pneg %p228
        %p425 = pneg %p225
        %s426 = sand.u32 %s215, 1
        %s427 = scalar_lea.sflag [#allocation12], %s426
        %s428 = sand.u32 %s215, 1
        %s429 = smul.addr %s428, 8
        %s430 = scalar_lea.vmem [#allocation11], %s429
        %p431 = scmp.lt.s32.totalorder %s37, 1
        %s432 = scalar_select %p431, %s37, 1
        %p433 = scmp.lt.s32.totalorder %s38, 0
        %s434 = scalar_select %p433, %s38, 0
        %s435 = sadd.s32 %s434, %s432
        %s436 = smul.addr %s435, 2
        %s437 = scalar_lea.vmem %s4, %s436
        %v438 = vld [vmem:[%s348] sm:$0xf]
        %v439 = vld [vmem:[%s357] sm:$0xf]
        %v440 = vld [vmem:[%s366] sm:$0xf]
        %v441 = vld [vmem:[%s366 + $0x4] sm:$0xf]
        %v442 = vld [vmem:[%s366 + $0x8] sm:$0xf]
        %v443 = vld [vmem:[%s366 + $0xc] sm:$0xf]
        %v444 = vld [vmem:[%s375] sm:$0xf]
        %v445 = vld [vmem:[%s375 + $0x4] sm:$0xf]
        %v446 = vld [vmem:[%s375 + $0x8] sm:$0xf]
        %v447 = vld [vmem:[%s375 + $0xc] sm:$0xf]
        %v448 = vmul.f32 %v438, %v440
        %v449 = vmul.f32 %v438, %v441
        %v450 = vmul.f32 %v438, %v442
        %v451 = vmul.f32 %v438, %v443
        %v452 = vmul.f32 %v439, %v444
        %v453 = vmul.f32 %v439, %v445
        %v454 = vmul.f32 %v439, %v446
        %v455 = vmul.f32 %v439, %v447
        %v456 = vsub.f32 %v448, %v452
        %v457 = vsub.f32 %v449, %v453
        %v458 = vsub.f32 %v450, %v454
        %v459 = vsub.f32 %v451, %v455
        %v460 = vmul.f32 %v438, %v444
        %v461 = vmul.f32 %v438, %v445
        %v462 = vmul.f32 %v438, %v446
        %v463 = vmul.f32 %v438, %v447
        %v464 = vmul.f32 %v439, %v440
        %v465 = vmul.f32 %v439, %v441
        %v466 = vmul.f32 %v439, %v442
        %v467 = vmul.f32 %v439, %v443
        %v468 = vadd.f32 %v460, %v464
        %v469 = vadd.f32 %v461, %v465
        %v470 = vadd.f32 %v462, %v466
        %v471 = vadd.f32 %v463, %v467
        %v476 = vcombine.low %v456, %v457
        %v477 = vcombine.low %v458, %v459
        %v479 = vunpack.c.l.s4 1983009808
        %v480 = vunpack.c.0.s8 %v479
        %v481 = vlaneseq
        %v482 = vshrl.u32 %v481, 7
        %v483 = vsub.s32 %v480, %v482
        %v484 = vrot.slane %v476, %v483
        %v486 = vunpack.c.l.s4 1983009808
        %v487 = vunpack.c.0.s8 %v486
        %v488 = vlaneseq
        %v489 = vshrl.u32 %v488, 7
        %v490 = vsub.s32 %v487, %v489
        %v491 = vrot.slane %v477, %v490
        %v492 = vcombine.low %v484, %v491
        %v493 = vcombine.high %v484, %v491
        %v496 = vpack.c.bf16 %v492, %v492
        %v497 = vpack.c.bf16 %v493, %v493
        %v502 = vcombine.low %v468, %v469
        %v503 = vcombine.low %v470, %v471
        %v505 = vunpack.c.l.s4 1983009808
        %v506 = vunpack.c.0.s8 %v505
        %v507 = vlaneseq
        %v508 = vshrl.u32 %v507, 7
        %v509 = vsub.s32 %v506, %v508
        %v510 = vrot.slane %v502, %v509
        %v512 = vunpack.c.l.s4 1983009808
        %v513 = vunpack.c.0.s8 %v512
        %v514 = vlaneseq
        %v515 = vshrl.u32 %v514, 7
        %v516 = vsub.s32 %v513, %v515
        %v517 = vrot.slane %v503, %v516
        %v518 = vcombine.low %v510, %v517
        %v519 = vcombine.high %v510, %v517
        %v522 = vpack.c.bf16 %v518, %v518
        %v523 = vpack.c.bf16 %v519, %v519
        %v524 = vld [vmem:[%s437] sm:$0x3]
        %v525 = vlaneseq
        %v526 = vshrl.u32 %v525, 7
        %v527 = vadd.s32 %v526, 8
        %v528 = vcvt.s32.f32 %v526
        %v529 = vcvt.s32.f32 %v527
        %v530 = vsub.f32 %v528, 8.0
        %v531 = vsub.f32 %v529, 8.0
        %v532 = vlaneseq
        %v533 = vshrl.u32 %v532, 7
        %v534 = vsub.s32 0, %v533
        %v535 = vrot.slane %v524, %v534
        %v536 = vmul.f32 %v530, %v535
        %v537 = vmul.f32 %v531, %v535
        %v538 = vlaneseq
        %v539 = vshrl.u32 %v538, 7
        %v540 = vsub.s32 1, %v539
        %v541 = vrot.slane %v524, %v540
        %v542 = vmul.f32 %v530, %v541
        %v543 = vmul.f32 %v531, %v541
        %v544 = vand.u32 2147483647, %v536
        %vm545 = vcmp.le.f32.partialorder %v544, 0.7853982
        %vm546 = vcmp.lt.s32.totalorder %v536, 0
        %v547 = vand.u32 %v536, 2139095040
        %v548 = vshrl.u32 %v547, 23
        %v549 = vsub.s32 %v548, 127
        %v550 = vand.u32 2147483647, %v536
        %v551 = vand.u32 %v550, 8388607
        %v552 = vor.u32 %v551, 8388608
        %v553 = vsub.s32 0, %v552
        %v554 = vadd.s32 %v549, 1
        %vm555 = vcmp.gt.s32.totalorder %v554, 0
        %v556 = vsel %vm555, %v554, 0
        %v557 = vshrl.u32 %v556, 5
        %v558 = vand.u32 %v556, 31
        %v559 = vsub.s32 32, %v558
        %v560 = vshrl.u32 683565275, %v559
        %v561 = vshll.u32 683565275, %v558
        %v562 = vshrl.u32 2475754826, %v559
        %v563 = vor.u32 %v561, %v562
        %v564 = vshll.u32 2475754826, %v558
        %v565 = vshrl.u32 2131351028, %v559
        %v566 = vor.u32 %v564, %v565
        %v567 = vshll.u32 2131351028, %v558
        %v568 = vshrl.u32 2102212464, %v559
        %v569 = vor.u32 %v567, %v568
        %v570 = vshll.u32 2102212464, %v558
        %v571 = vshrl.u32 920167782, %v559
        %v572 = vor.u32 %v570, %v571
        %v573 = vshll.u32 920167782, %v558
        %v574 = vshrl.u32 1326507024, %v559
        %v575 = vor.u32 %v573, %v574
        %vm576 = vcmp.lt.s32.totalorder %v557, 1
        %vm577 = vcmp.lt.s32.totalorder %v557, 2
        %vm578 = vcmp.lt.s32.totalorder %v557, 3
        %vm579 = vcmp.lt.s32.totalorder %v557, 4
        %v580 = vsel %vm576, %v560, %v563
        %v581 = vsel %vm579, %v569, 2102212464
        %v582 = vsel %vm578, %v566, %v581
        %v583 = vsel %vm577, %v580, %v582
        %v584 = vsel %vm576, %v563, %v566
        %v585 = vsel %vm579, %v572, 920167782
        %v586 = vsel %vm578, %v569, %v585
        %v587 = vsel %vm577, %v584, %v586
        %v588 = vsel %vm576, %v566, %v569
        %v589 = vsel %vm579, %v575, 1326507024
        %v590 = vsel %vm578, %v572, %v589
        %v591 = vsel %vm577, %v588, %v590
        %v592 = vshll.u32 %v552, 8
        %v593 = vmul.u32.u64.compose %v592, %v591
        %v594 = vextract.low.u32 %v593
        %v595 = vextract.high.u32 %v593
        %v596 = vmul.u32.u64.compose %v592, %v587
        %v597 = vextract.low.u32 %v596
        %v598 = vextract.high.u32 %v596
        %v599 = vmul.u32 %v592, %v583
        %v600 = vadd.s32 %v595, %v597
        %vm601 = vc.u32 %v595, %v597
        %v602 = vadd.s32 %v598, 1
        %v603 = vsel %vm601, %v602, %v598
        %v604 = vadd.s32 %v599, %v603
        %v605 = vadd.s32 %v604, 536870912
        %v606 = vshrl.u32 %v605, 30
        %v607 = vshll.u32 %v606, 30
        %v608 = vsub.s32 %v604, %v607
        %vm609 = vcmp.lt.s32.totalorder %v608, 0
        %v610 = vsub.s32 0, %v608
        %v611 = vsel %vm609, %v610, %v608
        %v612 = vclz %v611
        %v613 = vsub.s32 %v612, 2
        %vm614 = vcmp.gt.s32.totalorder 0, %v613
        %v615 = vsel %vm614, 0, %v613
        %v616 = vsub.s32 32, %v615
        %v617 = vshll.u32 %v608, %v615
        %v618 = vshrl.u32 %v600, %v616
        %v619 = vor.u32 %v617, %v618
        %v620 = vsub.s32 4294967266, %v615
        %v621 = vadd.s32 %v620, 127
        %v622 = vshll.u32 %v621, 23
        %v623 = vor.u32 4788187, %v622
        %v624 = vand.u32 2147483647, %v623
        %v626 = vcvt.s32.f32 %v619
        %v627 = vmul.f32 %v626, %v624
        %v628 = vxor.u32 %v627, 2147483648
        %v629 = vsel %vm546, %v628, %v627
        %v630 = vsub.s32 4, %v606
        %v631 = vsel %vm546, %v630, %v606
        %v632 = vsel %vm545, %v536, %v629
        %v633 = vsel %vm545, 0, %v631
        %v634 = vcosq.f32.pop %v632
        %v635 = vsinq.f32.pop %v632
        %vm636 = vweird.f32 %v536
        %v637 = vand.u32 %v633, 3
        %vm638 = vcmp.lt.s32.totalorder %v637, 2
        %vm639 = vcmp.eq.s32.totalorder %v637, 0
        %v640 = vxor.u32 %v635, 2147483648
        %v641 = vsel %vm639, %v634, %v640
        %vm642 = vcmp.eq.s32.totalorder %v637, 2
        %v643 = vxor.u32 %v634, 2147483648
        %v644 = vsel %vm642, %v643, %v635
        %v645 = vsel %vm638, %v641, %v644
        %v646 = vsel %vm636, nan, %v645
        %v647 = vand.u32 2147483647, %v537
        %vm648 = vcmp.le.f32.partialorder %v647, 0.7853982
        %vm649 = vcmp.lt.s32.totalorder %v537, 0
        %v650 = vand.u32 %v537, 2139095040
        %v651 = vshrl.u32 %v650, 23
        %v652 = vsub.s32 %v651, 127
        %v653 = vand.u32 2147483647, %v537
        %v654 = vand.u32 %v653, 8388607
        %v655 = vor.u32 %v654, 8388608
        %v656 = vsub.s32 0, %v655
        %v657 = vadd.s32 %v652, 1
        %vm658 = vcmp.gt.s32.totalorder %v657, 0
        %v659 = vsel %vm658, %v657, 0
        %v660 = vshrl.u32 %v659, 5
        %v661 = vand.u32 %v659, 31
        %v662 = vsub.s32 32, %v661
        %v663 = vshrl.u32 683565275, %v662
        %v664 = vshll.u32 683565275, %v661
        %v665 = vshrl.u32 2475754826, %v662
        %v666 = vor.u32 %v664, %v665
        %v667 = vshll.u32 2475754826, %v661
        %v668 = vshrl.u32 2131351028, %v662
        %v669 = vor.u32 %v667, %v668
        %v670 = vshll.u32 2131351028, %v661
        %v671 = vshrl.u32 2102212464, %v662
        %v672 = vor.u32 %v670, %v671
        %v673 = vshll.u32 2102212464, %v661
        %v674 = vshrl.u32 920167782, %v662
        %v675 = vor.u32 %v673, %v674
        %v676 = vshll.u32 920167782, %v661
        %v677 = vshrl.u32 1326507024, %v662
        %v678 = vor.u32 %v676, %v677
        %vm679 = vcmp.lt.s32.totalorder %v660, 1
        %vm680 = vcmp.lt.s32.totalorder %v660, 2
        %vm681 = vcmp.lt.s32.totalorder %v660, 3
        %vm682 = vcmp.lt.s32.totalorder %v660, 4
        %v683 = vsel %vm679, %v663, %v666
        %v684 = vsel %vm682, %v672, 2102212464
        %v685 = vsel %vm681, %v669, %v684
        %v686 = vsel %vm680, %v683, %v685
        %v687 = vsel %vm679, %v666, %v669
        %v688 = vsel %vm682, %v675, 920167782
        %v689 = vsel %vm681, %v672, %v688
        %v690 = vsel %vm680, %v687, %v689
        %v691 = vsel %vm679, %v669, %v672
        %v692 = vsel %vm682, %v678, 1326507024
        %v693 = vsel %vm681, %v675, %v692
        %v694 = vsel %vm680, %v691, %v693
        %v695 = vshll.u32 %v655, 8
        %v696 = vmul.u32.u64.compose %v695, %v694
        %v697 = vextract.low.u32 %v696
        %v698 = vextract.high.u32 %v696
        %v699 = vmul.u32.u64.compose %v695, %v690
        %v700 = vextract.low.u32 %v699
        %v701 = vextract.high.u32 %v699
        %v702 = vmul.u32 %v695, %v686
        %v703 = vadd.s32 %v698, %v700
        %vm704 = vc.u32 %v698, %v700
        %v705 = vadd.s32 %v701, 1
        %v706 = vsel %vm704, %v705, %v701
        %v707 = vadd.s32 %v702, %v706
        %v708 = vadd.s32 %v707, 536870912
        %v709 = vshrl.u32 %v708, 30
        %v710 = vshll.u32 %v709, 30
        %v711 = vsub.s32 %v707, %v710
        %vm712 = vcmp.lt.s32.totalorder %v711, 0
        %v713 = vsub.s32 0, %v711
        %v714 = vsel %vm712, %v713, %v711
        %v715 = vclz %v714
        %v716 = vsub.s32 %v715, 2
        %vm717 = vcmp.gt.s32.totalorder 0, %v716
        %v718 = vsel %vm717, 0, %v716
        %v719 = vsub.s32 32, %v718
        %v720 = vshll.u32 %v711, %v718
        %v721 = vshrl.u32 %v703, %v719
        %v722 = vor.u32 %v720, %v721
        %v723 = vsub.s32 4294967266, %v718
        %v724 = vadd.s32 %v723, 127
        %v725 = vshll.u32 %v724, 23
        %v726 = vor.u32 4788187, %v725
        %v727 = vand.u32 2147483647, %v726
        %v729 = vcvt.s32.f32 %v722
        %v730 = vmul.f32 %v729, %v727
        %v731 = vxor.u32 %v730, 2147483648
        %v732 = vsel %vm649, %v731, %v730
        %v733 = vsub.s32 4, %v709
        %v734 = vsel %vm649, %v733, %v709
        %v735 = vsel %vm648, %v537, %v732
        %v736 = vsel %vm648, 0, %v734
        %v737 = vcosq.f32.pop %v735
        %v738 = vsinq.f32.pop %v735
        %vm739 = vweird.f32 %v537
        %v740 = vand.u32 %v736, 3
        %vm741 = vcmp.lt.s32.totalorder %v740, 2
        %vm742 = vcmp.eq.s32.totalorder %v740, 0
        %v743 = vxor.u32 %v738, 2147483648
        %v744 = vsel %vm742, %v737, %v743
        %vm745 = vcmp.eq.s32.totalorder %v740, 2
        %v746 = vxor.u32 %v737, 2147483648
        %v747 = vsel %vm745, %v746, %v738
        %v748 = vsel %vm741, %v744, %v747
        %v749 = vsel %vm739, nan, %v748
        %v750 = vand.u32 2147483647, %v536
        %vm751 = vcmp.le.f32.partialorder %v750, 0.7853982
        %vm752 = vcmp.lt.s32.totalorder %v536, 0
        %v753 = vand.u32 %v536, 2139095040
        %v754 = vshrl.u32 %v753, 23
        %v755 = vsub.s32 %v754, 127
        %v756 = vand.u32 2147483647, %v536
        %v757 = vand.u32 %v756, 8388607
        %v758 = vor.u32 %v757, 8388608
        %v759 = vsub.s32 0, %v758
        %v760 = vadd.s32 %v755, 1
        %vm761 = vcmp.gt.s32.totalorder %v760, 0
        %v762 = vsel %vm761, %v760, 0
        %v763 = vshrl.u32 %v762, 5
        %v764 = vand.u32 %v762, 31
        %v765 = vsub.s32 32, %v764
        %v766 = vshrl.u32 683565275, %v765
        %v767 = vshll.u32 683565275, %v764
        %v768 = vshrl.u32 2475754826, %v765
        %v769 = vor.u32 %v767, %v768
        %v770 = vshll.u32 2475754826, %v764
        %v771 = vshrl.u32 2131351028, %v765
        %v772 = vor.u32 %v770, %v771
        %v773 = vshll.u32 2131351028, %v764
        %v774 = vshrl.u32 2102212464, %v765
        %v775 = vor.u32 %v773, %v774
        %v776 = vshll.u32 2102212464, %v764
        %v777 = vshrl.u32 920167782, %v765
        %v778 = vor.u32 %v776, %v777
        %v779 = vshll.u32 920167782, %v764
        %v780 = vshrl.u32 1326507024, %v765
        %v781 = vor.u32 %v779, %v780
        %vm782 = vcmp.lt.s32.totalorder %v763, 1
        %vm783 = vcmp.lt.s32.totalorder %v763, 2
        %vm784 = vcmp.lt.s32.totalorder %v763, 3
        %vm785 = vcmp.lt.s32.totalorder %v763, 4
        %v786 = vsel %vm782, %v766, %v769
        %v787 = vsel %vm785, %v775, 2102212464
        %v788 = vsel %vm784, %v772, %v787
        %v789 = vsel %vm783, %v786, %v788
        %v790 = vsel %vm782, %v769, %v772
        %v791 = vsel %vm785, %v778, 920167782
        %v792 = vsel %vm784, %v775, %v791
        %v793 = vsel %vm783, %v790, %v792
        %v794 = vsel %vm782, %v772, %v775
        %v795 = vsel %vm785, %v781, 1326507024
        %v796 = vsel %vm784, %v778, %v795
        %v797 = vsel %vm783, %v794, %v796
        %v798 = vshll.u32 %v758, 8
        %v799 = vmul.u32.u64.compose %v798, %v797
        %v800 = vextract.low.u32 %v799
        %v801 = vextract.high.u32 %v799
        %v802 = vmul.u32.u64.compose %v798, %v793
        %v803 = vextract.low.u32 %v802
        %v804 = vextract.high.u32 %v802
        %v805 = vmul.u32 %v798, %v789
        %v806 = vadd.s32 %v801, %v803
        %vm807 = vc.u32 %v801, %v803
        %v808 = vadd.s32 %v804, 1
        %v809 = vsel %vm807, %v808, %v804
        %v810 = vadd.s32 %v805, %v809
        %v811 = vadd.s32 %v810, 536870912
        %v812 = vshrl.u32 %v811, 30
        %v813 = vshll.u32 %v812, 30
        %v814 = vsub.s32 %v810, %v813
        %vm815 = vcmp.lt.s32.totalorder %v814, 0
        %v816 = vsub.s32 0, %v814
        %v817 = vsel %vm815, %v816, %v814
        %v818 = vclz %v817
        %v819 = vsub.s32 %v818, 2
        %vm820 = vcmp.gt.s32.totalorder 0, %v819
        %v821 = vsel %vm820, 0, %v819
        %v822 = vsub.s32 32, %v821
        %v823 = vshll.u32 %v814, %v821
        %v824 = vshrl.u32 %v806, %v822
        %v825 = vor.u32 %v823, %v824
        %v826 = vsub.s32 4294967266, %v821
        %v827 = vadd.s32 %v826, 127
        %v828 = vshll.u32 %v827, 23
        %v829 = vor.u32 4788187, %v828
        %v830 = vand.u32 2147483647, %v829
        %v832 = vcvt.s32.f32 %v825
        %v833 = vmul.f32 %v832, %v830
        %v834 = vxor.u32 %v833, 2147483648
        %v835 = vsel %vm752, %v834, %v833
        %v836 = vsub.s32 4, %v812
        %v837 = vsel %vm752, %v836, %v812
        %v838 = vsel %vm751, %v536, %v835
        %v839 = vsel %vm751, 0, %v837
        %v840 = vcosq.f32.pop %v838
        %v841 = vsinq.f32.pop %v838
        %vm842 = vweird.f32 %v536
        %v843 = vadd.s32 %v839, 3
        %v844 = vand.u32 %v843, 3
        %vm845 = vcmp.lt.s32.totalorder %v844, 2
        %vm846 = vcmp.eq.s32.totalorder %v844, 0
        %v847 = vxor.u32 %v841, 2147483648
        %v848 = vsel %vm846, %v840, %v847
        %vm849 = vcmp.eq.s32.totalorder %v844, 2
        %v850 = vxor.u32 %v840, 2147483648
        %v851 = vsel %vm849, %v850, %v841
        %v852 = vsel %vm845, %v848, %v851
        %v853 = vsel %vm842, nan, %v852
        %v854 = vand.u32 2147483647, %v537
        %vm855 = vcmp.le.f32.partialorder %v854, 0.7853982
        %vm856 = vcmp.lt.s32.totalorder %v537, 0
        %v857 = vand.u32 %v537, 2139095040
        %v858 = vshrl.u32 %v857, 23
        %v859 = vsub.s32 %v858, 127
        %v860 = vand.u32 2147483647, %v537
        %v861 = vand.u32 %v860, 8388607
        %v862 = vor.u32 %v861, 8388608
        %v863 = vsub.s32 0, %v862
        %v864 = vadd.s32 %v859, 1
        %vm865 = vcmp.gt.s32.totalorder %v864, 0
        %v866 = vsel %vm865, %v864, 0
        %v867 = vshrl.u32 %v866, 5
        %v868 = vand.u32 %v866, 31
        %v869 = vsub.s32 32, %v868
        %v870 = vshrl.u32 683565275, %v869
        %v871 = vshll.u32 683565275, %v868
        %v872 = vshrl.u32 2475754826, %v869
        %v873 = vor.u32 %v871, %v872
        %v874 = vshll.u32 2475754826, %v868
        %v875 = vshrl.u32 2131351028, %v869
        %v876 = vor.u32 %v874, %v875
        %v877 = vshll.u32 2131351028, %v868
        %v878 = vshrl.u32 2102212464, %v869
        %v879 = vor.u32 %v877, %v878
        %v880 = vshll.u32 2102212464, %v868
        %v881 = vshrl.u32 920167782, %v869
        %v882 = vor.u32 %v880, %v881
        %v883 = vshll.u32 920167782, %v868
        %v884 = vshrl.u32 1326507024, %v869
        %v885 = vor.u32 %v883, %v884
        %vm886 = vcmp.lt.s32.totalorder %v867, 1
        %vm887 = vcmp.lt.s32.totalorder %v867, 2
        %vm888 = vcmp.lt.s32.totalorder %v867, 3
        %vm889 = vcmp.lt.s32.totalorder %v867, 4
        %v890 = vsel %vm886, %v870, %v873
        %v891 = vsel %vm889, %v879, 2102212464
        %v892 = vsel %vm888, %v876, %v891
        %v893 = vsel %vm887, %v890, %v892
        %v894 = vsel %vm886, %v873, %v876
        %v895 = vsel %vm889, %v882, 920167782
        %v896 = vsel %vm888, %v879, %v895
        %v897 = vsel %vm887, %v894, %v896
        %v898 = vsel %vm886, %v876, %v879
        %v899 = vsel %vm889, %v885, 1326507024
        %v900 = vsel %vm888, %v882, %v899
        %v901 = vsel %vm887, %v898, %v900
        %v902 = vshll.u32 %v862, 8
        %v903 = vmul.u32.u64.compose %v902, %v901
        %v904 = vextract.low.u32 %v903
        %v905 = vextract.high.u32 %v903
        %v906 = vmul.u32.u64.compose %v902, %v897
        %v907 = vextract.low.u32 %v906
        %v908 = vextract.high.u32 %v906
        %v909 = vmul.u32 %v902, %v893
        %v910 = vadd.s32 %v905, %v907
        %vm911 = vc.u32 %v905, %v907
        %v912 = vadd.s32 %v908, 1
        %v913 = vsel %vm911, %v912, %v908
        %v914 = vadd.s32 %v909, %v913
        %v915 = vadd.s32 %v914, 536870912
        %v916 = vshrl.u32 %v915, 30
        %v917 = vshll.u32 %v916, 30
        %v918 = vsub.s32 %v914, %v917
        %vm919 = vcmp.lt.s32.totalorder %v918, 0
        %v920 = vsub.s32 0, %v918
        %v921 = vsel %vm919, %v920, %v918
        %v922 = vclz %v921
        %v923 = vsub.s32 %v922, 2
        %vm924 = vcmp.gt.s32.totalorder 0, %v923
        %v925 = vsel %vm924, 0, %v923
        %v926 = vsub.s32 32, %v925
        %v927 = vshll.u32 %v918, %v925
        %v928 = vshrl.u32 %v910, %v926
        %v929 = vor.u32 %v927, %v928
        %v930 = vsub.s32 4294967266, %v925
        %v931 = vadd.s32 %v930, 127
        %v932 = vshll.u32 %v931, 23
        %v933 = vor.u32 4788187, %v932
        %v934 = vand.u32 2147483647, %v933
        %v936 = vcvt.s32.f32 %v929
        %v937 = vmul.f32 %v936, %v934
        %v938 = vxor.u32 %v937, 2147483648
        %v939 = vsel %vm856, %v938, %v937
        %v940 = vsub.s32 4, %v916
        %v941 = vsel %vm856, %v940, %v916
        %v942 = vsel %vm855, %v537, %v939
        %v943 = vsel %vm855, 0, %v941
        %v944 = vcosq.f32.pop %v942
        %v945 = vsinq.f32.pop %v942
        %vm946 = vweird.f32 %v537
        %v947 = vadd.s32 %v943, 3
        %v948 = vand.u32 %v947, 3
        %vm949 = vcmp.lt.s32.totalorder %v948, 2
        %vm950 = vcmp.eq.s32.totalorder %v948, 0
        %v951 = vxor.u32 %v945, 2147483648
        %v952 = vsel %vm950, %v944, %v951
        %vm953 = vcmp.eq.s32.totalorder %v948, 2
        %v954 = vxor.u32 %v944, 2147483648
        %v955 = vsel %vm953, %v954, %v945
        %v956 = vsel %vm949, %v952, %v955
        %v957 = vsel %vm946, nan, %v956
        %v958 = vand.u32 2147483647, %v542
        %vm959 = vcmp.le.f32.partialorder %v958, 0.7853982
        %vm960 = vcmp.lt.s32.totalorder %v542, 0
        %v961 = vand.u32 %v542, 2139095040
        %v962 = vshrl.u32 %v961, 23
        %v963 = vsub.s32 %v962, 127
        %v964 = vand.u32 2147483647, %v542
        %v965 = vand.u32 %v964, 8388607
        %v966 = vor.u32 %v965, 8388608
        %v967 = vsub.s32 0, %v966
        %v968 = vadd.s32 %v963, 1
        %vm969 = vcmp.gt.s32.totalorder %v968, 0
        %v970 = vsel %vm969, %v968, 0
        %v971 = vshrl.u32 %v970, 5
        %v972 = vand.u32 %v970, 31
        %v973 = vsub.s32 32, %v972
        %v974 = vshrl.u32 683565275, %v973
        %v975 = vshll.u32 683565275, %v972
        %v976 = vshrl.u32 2475754826, %v973
        %v977 = vor.u32 %v975, %v976
        %v978 = vshll.u32 2475754826, %v972
        %v979 = vshrl.u32 2131351028, %v973
        %v980 = vor.u32 %v978, %v979
        %v981 = vshll.u32 2131351028, %v972
        %v982 = vshrl.u32 2102212464, %v973
        %v983 = vor.u32 %v981, %v982
        %v984 = vshll.u32 2102212464, %v972
        %v985 = vshrl.u32 920167782, %v973
        %v986 = vor.u32 %v984, %v985
        %v987 = vshll.u32 920167782, %v972
        %v988 = vshrl.u32 1326507024, %v973
        %v989 = vor.u32 %v987, %v988
        %vm990 = vcmp.lt.s32.totalorder %v971, 1
        %vm991 = vcmp.lt.s32.totalorder %v971, 2
        %vm992 = vcmp.lt.s32.totalorder %v971, 3
        %vm993 = vcmp.lt.s32.totalorder %v971, 4
        %v994 = vsel %vm990, %v974, %v977
        %v995 = vsel %vm993, %v983, 2102212464
        %v996 = vsel %vm992, %v980, %v995
        %v997 = vsel %vm991, %v994, %v996
        %v998 = vsel %vm990, %v977, %v980
        %v999 = vsel %vm993, %v986, 920167782
        %v1000 = vsel %vm992, %v983, %v999
        %v1001 = vsel %vm991, %v998, %v1000
        %v1002 = vsel %vm990, %v980, %v983
        %v1003 = vsel %vm993, %v989, 1326507024
        %v1004 = vsel %vm992, %v986, %v1003
        %v1005 = vsel %vm991, %v1002, %v1004
        %v1006 = vshll.u32 %v966, 8
        %v1007 = vmul.u32.u64.compose %v1006, %v1005
        %v1008 = vextract.low.u32 %v1007
        %v1009 = vextract.high.u32 %v1007
        %v1010 = vmul.u32.u64.compose %v1006, %v1001
        %v1011 = vextract.low.u32 %v1010
        %v1012 = vextract.high.u32 %v1010
        %v1013 = vmul.u32 %v1006, %v997
        %v1014 = vadd.s32 %v1009, %v1011
        %vm1015 = vc.u32 %v1009, %v1011
        %v1016 = vadd.s32 %v1012, 1
        %v1017 = vsel %vm1015, %v1016, %v1012
        %v1018 = vadd.s32 %v1013, %v1017
        %v1019 = vadd.s32 %v1018, 536870912
        %v1020 = vshrl.u32 %v1019, 30
        %v1021 = vshll.u32 %v1020, 30
        %v1022 = vsub.s32 %v1018, %v1021
        %vm1023 = vcmp.lt.s32.totalorder %v1022, 0
        %v1024 = vsub.s32 0, %v1022
        %v1025 = vsel %vm1023, %v1024, %v1022
        %v1026 = vclz %v1025
        %v1027 = vsub.s32 %v1026, 2
        %vm1028 = vcmp.gt.s32.totalorder 0, %v1027
        %v1029 = vsel %vm1028, 0, %v1027
        %v1030 = vsub.s32 32, %v1029
        %v1031 = vshll.u32 %v1022, %v1029
        %v1032 = vshrl.u32 %v1014, %v1030
        %v1033 = vor.u32 %v1031, %v1032
        %v1034 = vsub.s32 4294967266, %v1029
        %v1035 = vadd.s32 %v1034, 127
        %v1036 = vshll.u32 %v1035, 23
        %v1037 = vor.u32 4788187, %v1036
        %v1038 = vand.u32 2147483647, %v1037
        %v1040 = vcvt.s32.f32 %v1033
        %v1041 = vmul.f32 %v1040, %v1038
        %v1042 = vxor.u32 %v1041, 2147483648
        %v1043 = vsel %vm960, %v1042, %v1041
        %v1044 = vsub.s32 4, %v1020
        %v1045 = vsel %vm960, %v1044, %v1020
        %v1046 = vsel %vm959, %v542, %v1043
        %v1047 = vsel %vm959, 0, %v1045
        %v1048 = vcosq.f32.pop %v1046
        %v1049 = vsinq.f32.pop %v1046
        %vm1050 = vweird.f32 %v542
        %v1051 = vand.u32 %v1047, 3
        %vm1052 = vcmp.lt.s32.totalorder %v1051, 2
        %vm1053 = vcmp.eq.s32.totalorder %v1051, 0
        %v1054 = vxor.u32 %v1049, 2147483648
        %v1055 = vsel %vm1053, %v1048, %v1054
        %vm1056 = vcmp.eq.s32.totalorder %v1051, 2
        %v1057 = vxor.u32 %v1048, 2147483648
        %v1058 = vsel %vm1056, %v1057, %v1049
        %v1059 = vsel %vm1052, %v1055, %v1058
        %v1060 = vsel %vm1050, nan, %v1059
        %v1061 = vand.u32 2147483647, %v543
        %vm1062 = vcmp.le.f32.partialorder %v1061, 0.7853982
        %vm1063 = vcmp.lt.s32.totalorder %v543, 0
        %v1064 = vand.u32 %v543, 2139095040
        %v1065 = vshrl.u32 %v1064, 23
        %v1066 = vsub.s32 %v1065, 127
        %v1067 = vand.u32 2147483647, %v543
        %v1068 = vand.u32 %v1067, 8388607
        %v1069 = vor.u32 %v1068, 8388608
        %v1070 = vsub.s32 0, %v1069
        %v1071 = vadd.s32 %v1066, 1
        %vm1072 = vcmp.gt.s32.totalorder %v1071, 0
        %v1073 = vsel %vm1072, %v1071, 0
        %v1074 = vshrl.u32 %v1073, 5
        %v1075 = vand.u32 %v1073, 31
        %v1076 = vsub.s32 32, %v1075
        %v1077 = vshrl.u32 683565275, %v1076
        %v1078 = vshll.u32 683565275, %v1075
        %v1079 = vshrl.u32 2475754826, %v1076
        %v1080 = vor.u32 %v1078, %v1079
        %v1081 = vshll.u32 2475754826, %v1075
        %v1082 = vshrl.u32 2131351028, %v1076
        %v1083 = vor.u32 %v1081, %v1082
        %v1084 = vshll.u32 2131351028, %v1075
        %v1085 = vshrl.u32 2102212464, %v1076
        %v1086 = vor.u32 %v1084, %v1085
        %v1087 = vshll.u32 2102212464, %v1075
        %v1088 = vshrl.u32 920167782, %v1076
        %v1089 = vor.u32 %v1087, %v1088
        %v1090 = vshll.u32 920167782, %v1075
        %v1091 = vshrl.u32 1326507024, %v1076
        %v1092 = vor.u32 %v1090, %v1091
        %vm1093 = vcmp.lt.s32.totalorder %v1074, 1
        %vm1094 = vcmp.lt.s32.totalorder %v1074, 2
        %vm1095 = vcmp.lt.s32.totalorder %v1074, 3
        %vm1096 = vcmp.lt.s32.totalorder %v1074, 4
        %v1097 = vsel %vm1093, %v1077, %v1080
        %v1098 = vsel %vm1096, %v1086, 2102212464
        %v1099 = vsel %vm1095, %v1083, %v1098
        %v1100 = vsel %vm1094, %v1097, %v1099
        %v1101 = vsel %vm1093, %v1080, %v1083
        %v1102 = vsel %vm1096, %v1089, 920167782
        %v1103 = vsel %vm1095, %v1086, %v1102
        %v1104 = vsel %vm1094, %v1101, %v1103
        %v1105 = vsel %vm1093, %v1083, %v1086
        %v1106 = vsel %vm1096, %v1092, 1326507024
        %v1107 = vsel %vm1095, %v1089, %v1106
        %v1108 = vsel %vm1094, %v1105, %v1107
        %v1109 = vshll.u32 %v1069, 8
        %v1110 = vmul.u32.u64.compose %v1109, %v1108
        %v1111 = vextract.low.u32 %v1110
        %v1112 = vextract.high.u32 %v1110
        %v1113 = vmul.u32.u64.compose %v1109, %v1104
        %v1114 = vextract.low.u32 %v1113
        %v1115 = vextract.high.u32 %v1113
        %v1116 = vmul.u32 %v1109, %v1100
        %v1117 = vadd.s32 %v1112, %v1114
        %vm1118 = vc.u32 %v1112, %v1114
        %v1119 = vadd.s32 %v1115, 1
        %v1120 = vsel %vm1118, %v1119, %v1115
        %v1121 = vadd.s32 %v1116, %v1120
        %v1122 = vadd.s32 %v1121, 536870912
        %v1123 = vshrl.u32 %v1122, 30
        %v1124 = vshll.u32 %v1123, 30
        %v1125 = vsub.s32 %v1121, %v1124
        %vm1126 = vcmp.lt.s32.totalorder %v1125, 0
        %v1127 = vsub.s32 0, %v1125
        %v1128 = vsel %vm1126, %v1127, %v1125
        %v1129 = vclz %v1128
        %v1130 = vsub.s32 %v1129, 2
        %vm1131 = vcmp.gt.s32.totalorder 0, %v1130
        %v1132 = vsel %vm1131, 0, %v1130
        %v1133 = vsub.s32 32, %v1132
        %v1134 = vshll.u32 %v1125, %v1132
        %v1135 = vshrl.u32 %v1117, %v1133
        %v1136 = vor.u32 %v1134, %v1135
        %v1137 = vsub.s32 4294967266, %v1132
        %v1138 = vadd.s32 %v1137, 127
        %v1139 = vshll.u32 %v1138, 23
        %v1140 = vor.u32 4788187, %v1139
        %v1141 = vand.u32 2147483647, %v1140
        %v1143 = vcvt.s32.f32 %v1136
        %v1144 = vmul.f32 %v1143, %v1141
        %v1145 = vxor.u32 %v1144, 2147483648
        %v1146 = vsel %vm1063, %v1145, %v1144
        %v1147 = vsub.s32 4, %v1123
        %v1148 = vsel %vm1063, %v1147, %v1123
        %v1149 = vsel %vm1062, %v543, %v1146
        %v1150 = vsel %vm1062, 0, %v1148
        %v1151 = vcosq.f32.pop %v1149
        %v1152 = vsinq.f32.pop %v1149
        %vm1153 = vweird.f32 %v543
        %v1154 = vand.u32 %v1150, 3
        %vm1155 = vcmp.lt.s32.totalorder %v1154, 2
        %vm1156 = vcmp.eq.s32.totalorder %v1154, 0
        %v1157 = vxor.u32 %v1152, 2147483648
        %v1158 = vsel %vm1156, %v1151, %v1157
        %vm1159 = vcmp.eq.s32.totalorder %v1154, 2
        %v1160 = vxor.u32 %v1151, 2147483648
        %v1161 = vsel %vm1159, %v1160, %v1152
        %v1162 = vsel %vm1155, %v1158, %v1161
        %v1163 = vsel %vm1153, nan, %v1162
        %v1164 = vand.u32 2147483647, %v542
        %vm1165 = vcmp.le.f32.partialorder %v1164, 0.7853982
        %vm1166 = vcmp.lt.s32.totalorder %v542, 0
        %v1167 = vand.u32 %v542, 2139095040
        %v1168 = vshrl.u32 %v1167, 23
        %v1169 = vsub.s32 %v1168, 127
        %v1170 = vand.u32 2147483647, %v542
        %v1171 = vand.u32 %v1170, 8388607
        %v1172 = vor.u32 %v1171, 8388608
        %v1173 = vsub.s32 0, %v1172
        %v1174 = vadd.s32 %v1169, 1
        %vm1175 = vcmp.gt.s32.totalorder %v1174, 0
        %v1176 = vsel %vm1175, %v1174, 0
        %v1177 = vshrl.u32 %v1176, 5
        %v1178 = vand.u32 %v1176, 31
        %v1179 = vsub.s32 32, %v1178
        %v1180 = vshrl.u32 683565275, %v1179
        %v1181 = vshll.u32 683565275, %v1178
        %v1182 = vshrl.u32 2475754826, %v1179
        %v1183 = vor.u32 %v1181, %v1182
        %v1184 = vshll.u32 2475754826, %v1178
        %v1185 = vshrl.u32 2131351028, %v1179
        %v1186 = vor.u32 %v1184, %v1185
        %v1187 = vshll.u32 2131351028, %v1178
        %v1188 = vshrl.u32 2102212464, %v1179
        %v1189 = vor.u32 %v1187, %v1188
        %v1190 = vshll.u32 2102212464, %v1178
        %v1191 = vshrl.u32 920167782, %v1179
        %v1192 = vor.u32 %v1190, %v1191
        %v1193 = vshll.u32 920167782, %v1178
        %v1194 = vshrl.u32 1326507024, %v1179
        %v1195 = vor.u32 %v1193, %v1194
        %vm1196 = vcmp.lt.s32.totalorder %v1177, 1
        %vm1197 = vcmp.lt.s32.totalorder %v1177, 2
        %vm1198 = vcmp.lt.s32.totalorder %v1177, 3
        %vm1199 = vcmp.lt.s32.totalorder %v1177, 4
        %v1200 = vsel %vm1196, %v1180, %v1183
        %v1201 = vsel %vm1199, %v1189, 2102212464
        %v1202 = vsel %vm1198, %v1186, %v1201
        %v1203 = vsel %vm1197, %v1200, %v1202
        %v1204 = vsel %vm1196, %v1183, %v1186
        %v1205 = vsel %vm1199, %v1192, 920167782
        %v1206 = vsel %vm1198, %v1189, %v1205
        %v1207 = vsel %vm1197, %v1204, %v1206
        %v1208 = vsel %vm1196, %v1186, %v1189
        %v1209 = vsel %vm1199, %v1195, 1326507024
        %v1210 = vsel %vm1198, %v1192, %v1209
        %v1211 = vsel %vm1197, %v1208, %v1210
        %v1212 = vshll.u32 %v1172, 8
        %v1213 = vmul.u32.u64.compose %v1212, %v1211
        %v1214 = vextract.low.u32 %v1213
        %v1215 = vextract.high.u32 %v1213
        %v1216 = vmul.u32.u64.compose %v1212, %v1207
        %v1217 = vextract.low.u32 %v1216
        %v1218 = vextract.high.u32 %v1216
        %v1219 = vmul.u32 %v1212, %v1203
        %v1220 = vadd.s32 %v1215, %v1217
        %vm1221 = vc.u32 %v1215, %v1217
        %v1222 = vadd.s32 %v1218, 1
        %v1223 = vsel %vm1221, %v1222, %v1218
        %v1224 = vadd.s32 %v1219, %v1223
        %v1225 = vadd.s32 %v1224, 536870912
        %v1226 = vshrl.u32 %v1225, 30
        %v1227 = vshll.u32 %v1226, 30
        %v1228 = vsub.s32 %v1224, %v1227
        %vm1229 = vcmp.lt.s32.totalorder %v1228, 0
        %v1230 = vsub.s32 0, %v1228
        %v1231 = vsel %vm1229, %v1230, %v1228
        %v1232 = vclz %v1231
        %v1233 = vsub.s32 %v1232, 2
        %vm1234 = vcmp.gt.s32.totalorder 0, %v1233
        %v1235 = vsel %vm1234, 0, %v1233
        %v1236 = vsub.s32 32, %v1235
        %v1237 = vshll.u32 %v1228, %v1235
        %v1238 = vshrl.u32 %v1220, %v1236
        %v1239 = vor.u32 %v1237, %v1238
        %v1240 = vsub.s32 4294967266, %v1235
        %v1241 = vadd.s32 %v1240, 127
        %v1242 = vshll.u32 %v1241, 23
        %v1243 = vor.u32 4788187, %v1242
        %v1244 = vand.u32 2147483647, %v1243
        %v1246 = vcvt.s32.f32 %v1239
        %v1247 = vmul.f32 %v1246, %v1244
        %v1248 = vxor.u32 %v1247, 2147483648
        %v1249 = vsel %vm1166, %v1248, %v1247
        %v1250 = vsub.s32 4, %v1226
        %v1251 = vsel %vm1166, %v1250, %v1226
        %v1252 = vsel %vm1165, %v542, %v1249
        %v1253 = vsel %vm1165, 0, %v1251
        %v1254 = vcosq.f32.pop %v1252
        %v1255 = vsinq.f32.pop %v1252
        %vm1256 = vweird.f32 %v542
        %v1257 = vadd.s32 %v1253, 3
        %v1258 = vand.u32 %v1257, 3
        %vm1259 = vcmp.lt.s32.totalorder %v1258, 2
        %vm1260 = vcmp.eq.s32.totalorder %v1258, 0
        %v1261 = vxor.u32 %v1255, 2147483648
        %v1262 = vsel %vm1260, %v1254, %v1261
        %vm1263 = vcmp.eq.s32.totalorder %v1258, 2
        %v1264 = vxor.u32 %v1254, 2147483648
        %v1265 = vsel %vm1263, %v1264, %v1255
        %v1266 = vsel %vm1259, %v1262, %v1265
        %v1267 = vsel %vm1256, nan, %v1266
        %v1268 = vand.u32 2147483647, %v543
        %vm1269 = vcmp.le.f32.partialorder %v1268, 0.7853982
        %vm1270 = vcmp.lt.s32.totalorder %v543, 0
        %v1271 = vand.u32 %v543, 2139095040
        %v1272 = vshrl.u32 %v1271, 23
        %v1273 = vsub.s32 %v1272, 127
        %v1274 = vand.u32 2147483647, %v543
        %v1275 = vand.u32 %v1274, 8388607
        %v1276 = vor.u32 %v1275, 8388608
        %v1277 = vsub.s32 0, %v1276
        %v1278 = vadd.s32 %v1273, 1
        %vm1279 = vcmp.gt.s32.totalorder %v1278, 0
        %v1280 = vsel %vm1279, %v1278, 0
        %v1281 = vshrl.u32 %v1280, 5
        %v1282 = vand.u32 %v1280, 31
        %v1283 = vsub.s32 32, %v1282
        %v1284 = vshrl.u32 683565275, %v1283
        %v1285 = vshll.u32 683565275, %v1282
        %v1286 = vshrl.u32 2475754826, %v1283
        %v1287 = vor.u32 %v1285, %v1286
        %v1288 = vshll.u32 2475754826, %v1282
        %v1289 = vshrl.u32 2131351028, %v1283
        %v1290 = vor.u32 %v1288, %v1289
        %v1291 = vshll.u32 2131351028, %v1282
        %v1292 = vshrl.u32 2102212464, %v1283
        %v1293 = vor.u32 %v1291, %v1292
        %v1294 = vshll.u32 2102212464, %v1282
        %v1295 = vshrl.u32 920167782, %v1283
        %v1296 = vor.u32 %v1294, %v1295
        %v1297 = vshll.u32 920167782, %v1282
        %v1298 = vshrl.u32 1326507024, %v1283
        %v1299 = vor.u32 %v1297, %v1298
        %vm1300 = vcmp.lt.s32.totalorder %v1281, 1
        %vm1301 = vcmp.lt.s32.totalorder %v1281, 2
        %vm1302 = vcmp.lt.s32.totalorder %v1281, 3
        %vm1303 = vcmp.lt.s32.totalorder %v1281, 4
        %v1304 = vsel %vm1300, %v1284, %v1287
        %v1305 = vsel %vm1303, %v1293, 2102212464
        %v1306 = vsel %vm1302, %v1290, %v1305
        %v1307 = vsel %vm1301, %v1304, %v1306
        %v1308 = vsel %vm1300, %v1287, %v1290
        %v1309 = vsel %vm1303, %v1296, 920167782
        %v1310 = vsel %vm1302, %v1293, %v1309
        %v1311 = vsel %vm1301, %v1308, %v1310
        %v1312 = vsel %vm1300, %v1290, %v1293
        %v1313 = vsel %vm1303, %v1299, 1326507024
        %v1314 = vsel %vm1302, %v1296, %v1313
        %v1315 = vsel %vm1301, %v1312, %v1314
        %v1316 = vshll.u32 %v1276, 8
        %v1317 = vmul.u32.u64.compose %v1316, %v1315
        %v1318 = vextract.low.u32 %v1317
        %v1319 = vextract.high.u32 %v1317
        %v1320 = vmul.u32.u64.compose %v1316, %v1311
        %v1321 = vextract.low.u32 %v1320
        %v1322 = vextract.high.u32 %v1320
        %v1323 = vmul.u32 %v1316, %v1307
        %v1324 = vadd.s32 %v1319, %v1321
        %vm1325 = vc.u32 %v1319, %v1321
        %v1326 = vadd.s32 %v1322, 1
        %v1327 = vsel %vm1325, %v1326, %v1322
        %v1328 = vadd.s32 %v1323, %v1327
        %v1329 = vadd.s32 %v1328, 536870912
        %v1330 = vshrl.u32 %v1329, 30
        %v1331 = vshll.u32 %v1330, 30
        %v1332 = vsub.s32 %v1328, %v1331
        %vm1333 = vcmp.lt.s32.totalorder %v1332, 0
        %v1334 = vsub.s32 0, %v1332
        %v1335 = vsel %vm1333, %v1334, %v1332
        %v1336 = vclz %v1335
        %v1337 = vsub.s32 %v1336, 2
        %vm1338 = vcmp.gt.s32.totalorder 0, %v1337
        %v1339 = vsel %vm1338, 0, %v1337
        %v1340 = vsub.s32 32, %v1339
        %v1341 = vshll.u32 %v1332, %v1339
        %v1342 = vshrl.u32 %v1324, %v1340
        %v1343 = vor.u32 %v1341, %v1342
        %v1344 = vsub.s32 4294967266, %v1339
        %v1345 = vadd.s32 %v1344, 127
        %v1346 = vshll.u32 %v1345, 23
        %v1347 = vor.u32 4788187, %v1346
        %v1348 = vand.u32 2147483647, %v1347
        %v1350 = vcvt.s32.f32 %v1343
        %v1351 = vmul.f32 %v1350, %v1348
        %v1352 = vxor.u32 %v1351, 2147483648
        %v1353 = vsel %vm1270, %v1352, %v1351
        %v1354 = vsub.s32 4, %v1330
        %v1355 = vsel %vm1270, %v1354, %v1330
        %v1356 = vsel %vm1269, %v543, %v1353
        %v1357 = vsel %vm1269, 0, %v1355
        %v1358 = vcosq.f32.pop %v1356
        %v1359 = vsinq.f32.pop %v1356
        %vm1360 = vweird.f32 %v543
        %v1361 = vadd.s32 %v1357, 3
        %v1362 = vand.u32 %v1361, 3
        %vm1363 = vcmp.lt.s32.totalorder %v1362, 2
        %vm1364 = vcmp.eq.s32.totalorder %v1362, 0
        %v1365 = vxor.u32 %v1359, 2147483648
        %v1366 = vsel %vm1364, %v1358, %v1365
        %vm1367 = vcmp.eq.s32.totalorder %v1362, 2
        %v1368 = vxor.u32 %v1358, 2147483648
        %v1369 = vsel %vm1367, %v1368, %v1359
        %v1370 = vsel %vm1363, %v1366, %v1369
        %v1371 = vsel %vm1360, nan, %v1370
        %v1374 = vcombine.high %v646, %v646
        %v1376 = vunpack.c.l.s4 1966171168
        %v1377 = vunpack.c.0.s8 %v1376
        %v1378 = vlaneseq
        %v1379 = vshrl.u32 %v1378, 7
        %v1380 = vsub.s32 %v1377, %v1379
        %v1381 = vrot.slane %v646, %v1380
        %v1383 = vunpack.c.l.s4 1966171168
        %v1384 = vunpack.c.0.s8 %v1383
        %v1385 = vlaneseq
        %v1386 = vshrl.u32 %v1385, 7
        %v1387 = vsub.s32 %v1384, %v1386
        %v1388 = vrot.slane %v1374, %v1387
        %v1389 = vcombine.high %v1381, %v1381
        %v1390 = vcombine.high %v1388, %v1388
        %v1392 = vunpack.c.l.s4 1966171168
        %v1393 = vunpack.c.0.s8 %v1392
        %v1394 = vlaneseq
        %v1395 = vshrl.u32 %v1394, 7
        %v1396 = vsub.s32 %v1393, %v1395
        %v1397 = vrot.slane %v1381, %v1396
        %v1399 = vunpack.c.l.s4 1966171168
        %v1400 = vunpack.c.0.s8 %v1399
        %v1401 = vlaneseq
        %v1402 = vshrl.u32 %v1401, 7
        %v1403 = vsub.s32 %v1400, %v1402
        %v1404 = vrot.slane %v1388, %v1403
        %v1406 = vunpack.c.l.s4 1966171168
        %v1407 = vunpack.c.0.s8 %v1406
        %v1408 = vlaneseq
        %v1409 = vshrl.u32 %v1408, 7
        %v1410 = vsub.s32 %v1407, %v1409
        %v1411 = vrot.slane %v1389, %v1410
        %v1413 = vunpack.c.l.s4 1966171168
        %v1414 = vunpack.c.0.s8 %v1413
        %v1415 = vlaneseq
        %v1416 = vshrl.u32 %v1415, 7
        %v1417 = vsub.s32 %v1414, %v1416
        %v1418 = vrot.slane %v1390, %v1417
        %v1419 = vcombine.high %v1397, %v1397
        %v1420 = vcombine.high %v1404, %v1404
        %v1421 = vcombine.high %v1411, %v1411
        %v1422 = vcombine.high %v1418, %v1418
        %v1423 = vcombine.high %v749, %v749
        %v1425 = vunpack.c.l.s4 1966171168
        %v1426 = vunpack.c.0.s8 %v1425
        %v1427 = vlaneseq
        %v1428 = vshrl.u32 %v1427, 7
        %v1429 = vsub.s32 %v1426, %v1428
        %v1430 = vrot.slane %v749, %v1429
        %v1432 = vunpack.c.l.s4 1966171168
        %v1433 = vunpack.c.0.s8 %v1432
        %v1434 = vlaneseq
        %v1435 = vshrl.u32 %v1434, 7
        %v1436 = vsub.s32 %v1433, %v1435
        %v1437 = vrot.slane %v1423, %v1436
        %v1438 = vcombine.high %v1430, %v1430
        %v1439 = vcombine.high %v1437, %v1437
        %v1441 = vunpack.c.l.s4 1966171168
        %v1442 = vunpack.c.0.s8 %v1441
        %v1443 = vlaneseq
        %v1444 = vshrl.u32 %v1443, 7
        %v1445 = vsub.s32 %v1442, %v1444
        %v1446 = vrot.slane %v1430, %v1445
        %v1448 = vunpack.c.l.s4 1966171168
        %v1449 = vunpack.c.0.s8 %v1448
        %v1450 = vlaneseq
        %v1451 = vshrl.u32 %v1450, 7
        %v1452 = vsub.s32 %v1449, %v1451
        %v1453 = vrot.slane %v1437, %v1452
        %v1455 = vunpack.c.l.s4 1966171168
        %v1456 = vunpack.c.0.s8 %v1455
        %v1457 = vlaneseq
        %v1458 = vshrl.u32 %v1457, 7
        %v1459 = vsub.s32 %v1456, %v1458
        %v1460 = vrot.slane %v1438, %v1459
        %v1462 = vunpack.c.l.s4 1966171168
        %v1463 = vunpack.c.0.s8 %v1462
        %v1464 = vlaneseq
        %v1465 = vshrl.u32 %v1464, 7
        %v1466 = vsub.s32 %v1463, %v1465
        %v1467 = vrot.slane %v1439, %v1466
        %v1468 = vcombine.high %v1446, %v1446
        %v1469 = vcombine.high %v1453, %v1453
        %v1470 = vcombine.high %v1460, %v1460
        %v1471 = vcombine.high %v1467, %v1467
        %v1472 = vlaneseq
        %v1473 = vshrl.u32 %v1472, 7
        %v1474 = vsub.s32 0, %v1473
        %v1475 = vrot.slane %v1397, %v1474
        %v1476 = vlaneseq
        %v1477 = vshrl.u32 %v1476, 7
        %v1478 = vsub.s32 0, %v1477
        %v1479 = vrot.slane %v1411, %v1478
        %v1480 = vlaneseq
        %v1481 = vshrl.u32 %v1480, 7
        %v1482 = vsub.s32 0, %v1481
        %v1483 = vrot.slane %v1419, %v1482
        %v1484 = vlaneseq
        %v1485 = vshrl.u32 %v1484, 7
        %v1486 = vsub.s32 0, %v1485
        %v1487 = vrot.slane %v1421, %v1486
        %v1488 = vlaneseq
        %v1489 = vshrl.u32 %v1488, 7
        %v1490 = vsub.s32 0, %v1489
        %v1491 = vrot.slane %v1404, %v1490
        %v1492 = vlaneseq
        %v1493 = vshrl.u32 %v1492, 7
        %v1494 = vsub.s32 0, %v1493
        %v1495 = vrot.slane %v1418, %v1494
        %v1496 = vlaneseq
        %v1497 = vshrl.u32 %v1496, 7
        %v1498 = vsub.s32 0, %v1497
        %v1499 = vrot.slane %v1420, %v1498
        %v1500 = vlaneseq
        %v1501 = vshrl.u32 %v1500, 7
        %v1502 = vsub.s32 0, %v1501
        %v1503 = vrot.slane %v1422, %v1502
        %v1504 = vlaneseq
        %v1505 = vshrl.u32 %v1504, 7
        %v1506 = vsub.s32 0, %v1505
        %v1507 = vrot.slane %v1446, %v1506
        %v1508 = vlaneseq
        %v1509 = vshrl.u32 %v1508, 7
        %v1510 = vsub.s32 0, %v1509
        %v1511 = vrot.slane %v1460, %v1510
        %v1512 = vlaneseq
        %v1513 = vshrl.u32 %v1512, 7
        %v1514 = vsub.s32 0, %v1513
        %v1515 = vrot.slane %v1468, %v1514
        %v1516 = vlaneseq
        %v1517 = vshrl.u32 %v1516, 7
        %v1518 = vsub.s32 0, %v1517
        %v1519 = vrot.slane %v1470, %v1518
        %v1520 = vlaneseq
        %v1521 = vshrl.u32 %v1520, 7
        %v1522 = vsub.s32 0, %v1521
        %v1523 = vrot.slane %v1453, %v1522
        %v1524 = vlaneseq
        %v1525 = vshrl.u32 %v1524, 7
        %v1526 = vsub.s32 0, %v1525
        %v1527 = vrot.slane %v1467, %v1526
        %v1528 = vlaneseq
        %v1529 = vshrl.u32 %v1528, 7
        %v1530 = vsub.s32 0, %v1529
        %v1531 = vrot.slane %v1469, %v1530
        %v1532 = vlaneseq
        %v1533 = vshrl.u32 %v1532, 7
        %v1534 = vsub.s32 0, %v1533
        %v1535 = vrot.slane %v1471, %v1534
        %v1552 = vmul.f32 %v1475, %v1060
        %v1553 = vmul.f32 %v1475, %v1163
        %v1554 = vmul.f32 %v1479, %v1060
        %v1555 = vmul.f32 %v1479, %v1163
        %v1556 = vmul.f32 %v1483, %v1060
        %v1557 = vmul.f32 %v1483, %v1163
        %v1558 = vmul.f32 %v1487, %v1060
        %v1559 = vmul.f32 %v1487, %v1163
        %v1560 = vmul.f32 %v1491, %v1060
        %v1561 = vmul.f32 %v1491, %v1163
        %v1562 = vmul.f32 %v1495, %v1060
        %v1563 = vmul.f32 %v1495, %v1163
        %v1564 = vmul.f32 %v1499, %v1060
        %v1565 = vmul.f32 %v1499, %v1163
        %v1566 = vmul.f32 %v1503, %v1060
        %v1567 = vmul.f32 %v1503, %v1163
        %v1568 = vmul.f32 %v1507, %v1060
        %v1569 = vmul.f32 %v1507, %v1163
        %v1570 = vmul.f32 %v1511, %v1060
        %v1571 = vmul.f32 %v1511, %v1163
        %v1572 = vmul.f32 %v1515, %v1060
        %v1573 = vmul.f32 %v1515, %v1163
        %v1574 = vmul.f32 %v1519, %v1060
        %v1575 = vmul.f32 %v1519, %v1163
        %v1576 = vmul.f32 %v1523, %v1060
        %v1577 = vmul.f32 %v1523, %v1163
        %v1578 = vmul.f32 %v1527, %v1060
        %v1579 = vmul.f32 %v1527, %v1163
        %v1580 = vmul.f32 %v1531, %v1060
        %v1581 = vmul.f32 %v1531, %v1163
        %v1582 = vmul.f32 %v1535, %v1060
        %v1583 = vmul.f32 %v1535, %v1163
        %v1586 = vcombine.high %v853, %v853
        %v1588 = vunpack.c.l.s4 1966171168
        %v1589 = vunpack.c.0.s8 %v1588
        %v1590 = vlaneseq
        %v1591 = vshrl.u32 %v1590, 7
        %v1592 = vsub.s32 %v1589, %v1591
        %v1593 = vrot.slane %v853, %v1592
        %v1595 = vunpack.c.l.s4 1966171168
        %v1596 = vunpack.c.0.s8 %v1595
        %v1597 = vlaneseq
        %v1598 = vshrl.u32 %v1597, 7
        %v1599 = vsub.s32 %v1596, %v1598
        %v1600 = vrot.slane %v1586, %v1599
        %v1601 = vcombine.high %v1593, %v1593
        %v1602 = vcombine.high %v1600, %v1600
        %v1604 = vunpack.c.l.s4 1966171168
        %v1605 = vunpack.c.0.s8 %v1604
        %v1606 = vlaneseq
        %v1607 = vshrl.u32 %v1606, 7
        %v1608 = vsub.s32 %v1605, %v1607
        %v1609 = vrot.slane %v1593, %v1608
        %v1611 = vunpack.c.l.s4 1966171168
        %v1612 = vunpack.c.0.s8 %v1611
        %v1613 = vlaneseq
        %v1614 = vshrl.u32 %v1613, 7
        %v1615 = vsub.s32 %v1612, %v1614
        %v1616 = vrot.slane %v1600, %v1615
        %v1618 = vunpack.c.l.s4 1966171168
        %v1619 = vunpack.c.0.s8 %v1618
        %v1620 = vlaneseq
        %v1621 = vshrl.u32 %v1620, 7
        %v1622 = vsub.s32 %v1619, %v1621
        %v1623 = vrot.slane %v1601, %v1622
        %v1625 = vunpack.c.l.s4 1966171168
        %v1626 = vunpack.c.0.s8 %v1625
        %v1627 = vlaneseq
        %v1628 = vshrl.u32 %v1627, 7
        %v1629 = vsub.s32 %v1626, %v1628
        %v1630 = vrot.slane %v1602, %v1629
        %v1631 = vcombine.high %v1609, %v1609
        %v1632 = vcombine.high %v1616, %v1616
        %v1633 = vcombine.high %v1623, %v1623
        %v1634 = vcombine.high %v1630, %v1630
        %v1635 = vcombine.high %v957, %v957
        %v1637 = vunpack.c.l.s4 1966171168
        %v1638 = vunpack.c.0.s8 %v1637
        %v1639 = vlaneseq
        %v1640 = vshrl.u32 %v1639, 7
        %v1641 = vsub.s32 %v1638, %v1640
        %v1642 = vrot.slane %v957, %v1641
        %v1644 = vunpack.c.l.s4 1966171168
        %v1645 = vunpack.c.0.s8 %v1644
        %v1646 = vlaneseq
        %v1647 = vshrl.u32 %v1646, 7
        %v1648 = vsub.s32 %v1645, %v1647
        %v1649 = vrot.slane %v1635, %v1648
        %v1650 = vcombine.high %v1642, %v1642
        %v1651 = vcombine.high %v1649, %v1649
        %v1653 = vunpack.c.l.s4 1966171168
        %v1654 = vunpack.c.0.s8 %v1653
        %v1655 = vlaneseq
        %v1656 = vshrl.u32 %v1655, 7
        %v1657 = vsub.s32 %v1654, %v1656
        %v1658 = vrot.slane %v1642, %v1657
        %v1660 = vunpack.c.l.s4 1966171168
        %v1661 = vunpack.c.0.s8 %v1660
        %v1662 = vlaneseq
        %v1663 = vshrl.u32 %v1662, 7
        %v1664 = vsub.s32 %v1661, %v1663
        %v1665 = vrot.slane %v1649, %v1664
        %v1667 = vunpack.c.l.s4 1966171168
        %v1668 = vunpack.c.0.s8 %v1667
        %v1669 = vlaneseq
        %v1670 = vshrl.u32 %v1669, 7
        %v1671 = vsub.s32 %v1668, %v1670
        %v1672 = vrot.slane %v1650, %v1671
        %v1674 = vunpack.c.l.s4 1966171168
        %v1675 = vunpack.c.0.s8 %v1674
        %v1676 = vlaneseq
        %v1677 = vshrl.u32 %v1676, 7
        %v1678 = vsub.s32 %v1675, %v1677
        %v1679 = vrot.slane %v1651, %v1678
        %v1680 = vcombine.high %v1658, %v1658
        %v1681 = vcombine.high %v1665, %v1665
        %v1682 = vcombine.high %v1672, %v1672
        %v1683 = vcombine.high %v1679, %v1679
        %v1684 = vlaneseq
        %v1685 = vshrl.u32 %v1684, 7
        %v1686 = vsub.s32 0, %v1685
        %v1687 = vrot.slane %v1609, %v1686
        %v1688 = vlaneseq
        %v1689 = vshrl.u32 %v1688, 7
        %v1690 = vsub.s32 0, %v1689
        %v1691 = vrot.slane %v1623, %v1690
        %v1692 = vlaneseq
        %v1693 = vshrl.u32 %v1692, 7
        %v1694 = vsub.s32 0, %v1693
        %v1695 = vrot.slane %v1631, %v1694
        %v1696 = vlaneseq
        %v1697 = vshrl.u32 %v1696, 7
        %v1698 = vsub.s32 0, %v1697
        %v1699 = vrot.slane %v1633, %v1698
        %v1700 = vlaneseq
        %v1701 = vshrl.u32 %v1700, 7
        %v1702 = vsub.s32 0, %v1701
        %v1703 = vrot.slane %v1616, %v1702
        %v1704 = vlaneseq
        %v1705 = vshrl.u32 %v1704, 7
        %v1706 = vsub.s32 0, %v1705
        %v1707 = vrot.slane %v1630, %v1706
        %v1708 = vlaneseq
        %v1709 = vshrl.u32 %v1708, 7
        %v1710 = vsub.s32 0, %v1709
        %v1711 = vrot.slane %v1632, %v1710
        %v1712 = vlaneseq
        %v1713 = vshrl.u32 %v1712, 7
        %v1714 = vsub.s32 0, %v1713
        %v1715 = vrot.slane %v1634, %v1714
        %v1716 = vlaneseq
        %v1717 = vshrl.u32 %v1716, 7
        %v1718 = vsub.s32 0, %v1717
        %v1719 = vrot.slane %v1658, %v1718
        %v1720 = vlaneseq
        %v1721 = vshrl.u32 %v1720, 7
        %v1722 = vsub.s32 0, %v1721
        %v1723 = vrot.slane %v1672, %v1722
        %v1724 = vlaneseq
        %v1725 = vshrl.u32 %v1724, 7
        %v1726 = vsub.s32 0, %v1725
        %v1727 = vrot.slane %v1680, %v1726
        %v1728 = vlaneseq
        %v1729 = vshrl.u32 %v1728, 7
        %v1730 = vsub.s32 0, %v1729
        %v1731 = vrot.slane %v1682, %v1730
        %v1732 = vlaneseq
        %v1733 = vshrl.u32 %v1732, 7
        %v1734 = vsub.s32 0, %v1733
        %v1735 = vrot.slane %v1665, %v1734
        %v1736 = vlaneseq
        %v1737 = vshrl.u32 %v1736, 7
        %v1738 = vsub.s32 0, %v1737
        %v1739 = vrot.slane %v1679, %v1738
        %v1740 = vlaneseq
        %v1741 = vshrl.u32 %v1740, 7
        %v1742 = vsub.s32 0, %v1741
        %v1743 = vrot.slane %v1681, %v1742
        %v1744 = vlaneseq
        %v1745 = vshrl.u32 %v1744, 7
        %v1746 = vsub.s32 0, %v1745
        %v1747 = vrot.slane %v1683, %v1746
        %v1764 = vmul.f32 %v1687, %v1267
        %v1765 = vmul.f32 %v1687, %v1371
        %v1766 = vmul.f32 %v1691, %v1267
        %v1767 = vmul.f32 %v1691, %v1371
        %v1768 = vmul.f32 %v1695, %v1267
        %v1769 = vmul.f32 %v1695, %v1371
        %v1770 = vmul.f32 %v1699, %v1267
        %v1771 = vmul.f32 %v1699, %v1371
        %v1772 = vmul.f32 %v1703, %v1267
        %v1773 = vmul.f32 %v1703, %v1371
        %v1774 = vmul.f32 %v1707, %v1267
        %v1775 = vmul.f32 %v1707, %v1371
        %v1776 = vmul.f32 %v1711, %v1267
        %v1777 = vmul.f32 %v1711, %v1371
        %v1778 = vmul.f32 %v1715, %v1267
        %v1779 = vmul.f32 %v1715, %v1371
        %v1780 = vmul.f32 %v1719, %v1267
        %v1781 = vmul.f32 %v1719, %v1371
        %v1782 = vmul.f32 %v1723, %v1267
        %v1783 = vmul.f32 %v1723, %v1371
        %v1784 = vmul.f32 %v1727, %v1267
        %v1785 = vmul.f32 %v1727, %v1371
        %v1786 = vmul.f32 %v1731, %v1267
        %v1787 = vmul.f32 %v1731, %v1371
        %v1788 = vmul.f32 %v1735, %v1267
        %v1789 = vmul.f32 %v1735, %v1371
        %v1790 = vmul.f32 %v1739, %v1267
        %v1791 = vmul.f32 %v1739, %v1371
        %v1792 = vmul.f32 %v1743, %v1267
        %v1793 = vmul.f32 %v1743, %v1371
        %v1794 = vmul.f32 %v1747, %v1267
        %v1795 = vmul.f32 %v1747, %v1371
        %v1796 = vsub.f32 %v1552, %v1764
        %v1797 = vsub.f32 %v1553, %v1765
        %v1798 = vsub.f32 %v1554, %v1766
        %v1799 = vsub.f32 %v1555, %v1767
        %v1800 = vsub.f32 %v1556, %v1768
        %v1801 = vsub.f32 %v1557, %v1769
        %v1802 = vsub.f32 %v1558, %v1770
        %v1803 = vsub.f32 %v1559, %v1771
        %v1804 = vsub.f32 %v1560, %v1772
        %v1805 = vsub.f32 %v1561, %v1773
        %v1806 = vsub.f32 %v1562, %v1774
        %v1807 = vsub.f32 %v1563, %v1775
        %v1808 = vsub.f32 %v1564, %v1776
        %v1809 = vsub.f32 %v1565, %v1777
        %v1810 = vsub.f32 %v1566, %v1778
        %v1811 = vsub.f32 %v1567, %v1779
        %v1812 = vsub.f32 %v1568, %v1780
        %v1813 = vsub.f32 %v1569, %v1781
        %v1814 = vsub.f32 %v1570, %v1782
        %v1815 = vsub.f32 %v1571, %v1783
        %v1816 = vsub.f32 %v1572, %v1784
        %v1817 = vsub.f32 %v1573, %v1785
        %v1818 = vsub.f32 %v1574, %v1786
        %v1819 = vsub.f32 %v1575, %v1787
        %v1820 = vsub.f32 %v1576, %v1788
        %v1821 = vsub.f32 %v1577, %v1789
        %v1822 = vsub.f32 %v1578, %v1790
        %v1823 = vsub.f32 %v1579, %v1791
        %v1824 = vsub.f32 %v1580, %v1792
        %v1825 = vsub.f32 %v1581, %v1793
        %v1826 = vsub.f32 %v1582, %v1794
        %v1827 = vsub.f32 %v1583, %v1795
        %v1828 = vmul.f32 %v1687, %v1060
        %v1829 = vmul.f32 %v1687, %v1163
        %v1830 = vmul.f32 %v1691, %v1060
        %v1831 = vmul.f32 %v1691, %v1163
        %v1832 = vmul.f32 %v1695, %v1060
        %v1833 = vmul.f32 %v1695, %v1163
        %v1834 = vmul.f32 %v1699, %v1060
        %v1835 = vmul.f32 %v1699, %v1163
        %v1836 = vmul.f32 %v1703, %v1060
        %v1837 = vmul.f32 %v1703, %v1163
        %v1838 = vmul.f32 %v1707, %v1060
        %v1839 = vmul.f32 %v1707, %v1163
        %v1840 = vmul.f32 %v1711, %v1060
        %v1841 = vmul.f32 %v1711, %v1163
        %v1842 = vmul.f32 %v1715, %v1060
        %v1843 = vmul.f32 %v1715, %v1163
        %v1844 = vmul.f32 %v1719, %v1060
        %v1845 = vmul.f32 %v1719, %v1163
        %v1846 = vmul.f32 %v1723, %v1060
        %v1847 = vmul.f32 %v1723, %v1163
        %v1848 = vmul.f32 %v1727, %v1060
        %v1849 = vmul.f32 %v1727, %v1163
        %v1850 = vmul.f32 %v1731, %v1060
        %v1851 = vmul.f32 %v1731, %v1163
        %v1852 = vmul.f32 %v1735, %v1060
        %v1853 = vmul.f32 %v1735, %v1163
        %v1854 = vmul.f32 %v1739, %v1060
        %v1855 = vmul.f32 %v1739, %v1163
        %v1856 = vmul.f32 %v1743, %v1060
        %v1857 = vmul.f32 %v1743, %v1163
        %v1858 = vmul.f32 %v1747, %v1060
        %v1859 = vmul.f32 %v1747, %v1163
        %v1860 = vmul.f32 %v1475, %v1267
        %v1861 = vmul.f32 %v1475, %v1371
        %v1862 = vmul.f32 %v1479, %v1267
        %v1863 = vmul.f32 %v1479, %v1371
        %v1864 = vmul.f32 %v1483, %v1267
        %v1865 = vmul.f32 %v1483, %v1371
        %v1866 = vmul.f32 %v1487, %v1267
        %v1867 = vmul.f32 %v1487, %v1371
        %v1868 = vmul.f32 %v1491, %v1267
        %v1869 = vmul.f32 %v1491, %v1371
        %v1870 = vmul.f32 %v1495, %v1267
        %v1871 = vmul.f32 %v1495, %v1371
        %v1872 = vmul.f32 %v1499, %v1267
        %v1873 = vmul.f32 %v1499, %v1371
        %v1874 = vmul.f32 %v1503, %v1267
        %v1875 = vmul.f32 %v1503, %v1371
        %v1876 = vmul.f32 %v1507, %v1267
        %v1877 = vmul.f32 %v1507, %v1371
        %v1878 = vmul.f32 %v1511, %v1267
        %v1879 = vmul.f32 %v1511, %v1371
        %v1880 = vmul.f32 %v1515, %v1267
        %v1881 = vmul.f32 %v1515, %v1371
        %v1882 = vmul.f32 %v1519, %v1267
        %v1883 = vmul.f32 %v1519, %v1371
        %v1884 = vmul.f32 %v1523, %v1267
        %v1885 = vmul.f32 %v1523, %v1371
        %v1886 = vmul.f32 %v1527, %v1267
        %v1887 = vmul.f32 %v1527, %v1371
        %v1888 = vmul.f32 %v1531, %v1267
        %v1889 = vmul.f32 %v1531, %v1371
        %v1890 = vmul.f32 %v1535, %v1267
        %v1891 = vmul.f32 %v1535, %v1371
        %v1892 = vadd.f32 %v1828, %v1860
        %v1893 = vadd.f32 %v1829, %v1861
        %v1894 = vadd.f32 %v1830, %v1862
        %v1895 = vadd.f32 %v1831, %v1863
        %v1896 = vadd.f32 %v1832, %v1864
        %v1897 = vadd.f32 %v1833, %v1865
        %v1898 = vadd.f32 %v1834, %v1866
        %v1899 = vadd.f32 %v1835, %v1867
        %v1900 = vadd.f32 %v1836, %v1868
        %v1901 = vadd.f32 %v1837, %v1869
        %v1902 = vadd.f32 %v1838, %v1870
        %v1903 = vadd.f32 %v1839, %v1871
        %v1904 = vadd.f32 %v1840, %v1872
        %v1905 = vadd.f32 %v1841, %v1873
        %v1906 = vadd.f32 %v1842, %v1874
        %v1907 = vadd.f32 %v1843, %v1875
        %v1908 = vadd.f32 %v1844, %v1876
        %v1909 = vadd.f32 %v1845, %v1877
        %v1910 = vadd.f32 %v1846, %v1878
        %v1911 = vadd.f32 %v1847, %v1879
        %v1912 = vadd.f32 %v1848, %v1880
        %v1913 = vadd.f32 %v1849, %v1881
        %v1914 = vadd.f32 %v1850, %v1882
        %v1915 = vadd.f32 %v1851, %v1883
        %v1916 = vadd.f32 %v1852, %v1884
        %v1917 = vadd.f32 %v1853, %v1885
        %v1918 = vadd.f32 %v1854, %v1886
        %v1919 = vadd.f32 %v1855, %v1887
        %v1920 = vadd.f32 %v1856, %v1888
        %v1921 = vadd.f32 %v1857, %v1889
        %v1922 = vadd.f32 %v1858, %v1890
        %v1923 = vadd.f32 %v1859, %v1891
        %v1924 = vsub.f32 0.0, %v1892
        %v1925 = vsub.f32 0.0, %v1893
        %v1926 = vsub.f32 0.0, %v1894
        %v1927 = vsub.f32 0.0, %v1895
        %v1928 = vsub.f32 0.0, %v1896
        %v1929 = vsub.f32 0.0, %v1897
        %v1930 = vsub.f32 0.0, %v1898
        %v1931 = vsub.f32 0.0, %v1899
        %v1932 = vsub.f32 0.0, %v1900
        %v1933 = vsub.f32 0.0, %v1901
        %v1934 = vsub.f32 0.0, %v1902
        %v1935 = vsub.f32 0.0, %v1903
        %v1936 = vsub.f32 0.0, %v1904
        %v1937 = vsub.f32 0.0, %v1905
        %v1938 = vsub.f32 0.0, %v1906
        %v1939 = vsub.f32 0.0, %v1907
        %v1940 = vsub.f32 0.0, %v1908
        %v1941 = vsub.f32 0.0, %v1909
        %v1942 = vsub.f32 0.0, %v1910
        %v1943 = vsub.f32 0.0, %v1911
        %v1944 = vsub.f32 0.0, %v1912
        %v1945 = vsub.f32 0.0, %v1913
        %v1946 = vsub.f32 0.0, %v1914
        %v1947 = vsub.f32 0.0, %v1915
        %v1948 = vsub.f32 0.0, %v1916
        %v1949 = vsub.f32 0.0, %v1917
        %v1950 = vsub.f32 0.0, %v1918
        %v1951 = vsub.f32 0.0, %v1919
        %v1952 = vsub.f32 0.0, %v1920
        %v1953 = vsub.f32 0.0, %v1921
        %v1954 = vsub.f32 0.0, %v1922
        %v1955 = vsub.f32 0.0, %v1923
        %v1956 = vpack.c.bf16 %v1797, %v1796
        %v1957 = vpack.c.bf16 %v1799, %v1798
        %v1958 = vpack.c.bf16 %v1801, %v1800
        %v1959 = vpack.c.bf16 %v1803, %v1802
        %v1960 = vpack.c.bf16 %v1805, %v1804
        %v1961 = vpack.c.bf16 %v1807, %v1806
        %v1962 = vpack.c.bf16 %v1809, %v1808
        %v1963 = vpack.c.bf16 %v1811, %v1810
        %v1964 = vpack.c.bf16 %v1813, %v1812
        %v1965 = vpack.c.bf16 %v1815, %v1814
        %v1966 = vpack.c.bf16 %v1817, %v1816
        %v1967 = vpack.c.bf16 %v1819, %v1818
        %v1968 = vpack.c.bf16 %v1821, %v1820
        %v1969 = vpack.c.bf16 %v1823, %v1822
        %v1970 = vpack.c.bf16 %v1825, %v1824
        %v1971 = vpack.c.bf16 %v1827, %v1826
        %v1972 = vpack.c.bf16 %v1925, %v1924
        %v1973 = vpack.c.bf16 %v1927, %v1926
        %v1974 = vpack.c.bf16 %v1929, %v1928
        %v1975 = vpack.c.bf16 %v1931, %v1930
        %v1976 = vpack.c.bf16 %v1933, %v1932
        %v1977 = vpack.c.bf16 %v1935, %v1934
        %v1978 = vpack.c.bf16 %v1937, %v1936
        %v1979 = vpack.c.bf16 %v1939, %v1938
        %v1980 = vpack.c.bf16 %v1941, %v1940
        %v1981 = vpack.c.bf16 %v1943, %v1942
        %v1982 = vpack.c.bf16 %v1945, %v1944
        %v1983 = vpack.c.bf16 %v1947, %v1946
        %v1984 = vpack.c.bf16 %v1949, %v1948
        %v1985 = vpack.c.bf16 %v1951, %v1950
        %v1986 = vpack.c.bf16 %v1953, %v1952
        %v1987 = vpack.c.bf16 %v1955, %v1954
        %1988 = vmatprep.subr.bf16.mxu0 %v1972
        %1989 = vmatpush1.bf16.msra.mxu0 %v1956
        %1990 = vmatprep.subr.bf16.mxu0 %v1973
        %1991 = vmatpush1.bf16.msra.mxu0 %v1957
        %1992 = vmatprep.subr.bf16.mxu0 %v1974
        %1993 = vmatpush1.bf16.msra.mxu0 %v1958
        %1994 = vmatprep.subr.bf16.mxu0 %v1975
        %1995 = vmatpush1.bf16.msra.mxu0 %v1959
        %1996 = vmatprep.subr.bf16.mxu0 %v1976
        %1997 = vmatpush1.bf16.msra.mxu0 %v1960
        %1998 = vmatprep.subr.bf16.mxu0 %v1977
        %1999 = vmatpush1.bf16.msra.mxu0 %v1961
        %2000 = vmatprep.subr.bf16.mxu0 %v1978
        %2001 = vmatpush1.bf16.msra.mxu0 %v1962
        %2002 = vmatprep.subr.bf16.mxu0 %v1979
        %2003 = vmatpush1.bf16.msra.mxu0 %v1963
        %2004 = vmatprep.subr.bf16.mxu0 %v1980
        %2005 = vmatpush1.bf16.msra.mxu0 %v1964
        %2006 = vmatprep.subr.bf16.mxu0 %v1981
        %2007 = vmatpush1.bf16.msra.mxu0 %v1965
        %2008 = vmatprep.subr.bf16.mxu0 %v1982
        %2009 = vmatpush1.bf16.msra.mxu0 %v1966
        %2010 = vmatprep.subr.bf16.mxu0 %v1983
        %2011 = vmatpush1.bf16.msra.mxu0 %v1967
        %2012 = vmatprep.subr.bf16.mxu0 %v1984
        %2013 = vmatpush1.bf16.msra.mxu0 %v1968
        %2014 = vmatprep.subr.bf16.mxu0 %v1985
        %2015 = vmatpush1.bf16.msra.mxu0 %v1969
        %2016 = vmatprep.subr.bf16.mxu0 %v1986
        %2017 = vmatpush1.bf16.msra.mxu0 %v1970
        %2018 = vmatprep.subr.bf16.mxu0 %v1987
        %2019 = vmatpush1.bf16.msra.mxu0 %v1971
        %2020 = vmatprep.mubr.bf16.mxu0 %v497
        %2021 = vmatmul.mubr.bf16.gmra.mrb[0].mxu0 %v496
        %v2022 = vpop.f32.mrb[0].mxu0
        %v2023 = vadd.f32 0.0, %v2022
        %v2024 = vpop.f32.mrb[0].mxu0
        %v2025 = vadd.f32 0.0, %v2024
        %v2026 = vpop.f32.mrb[0].mxu0
        %v2027 = vpop.f32.mrb[0].mxu0
        %2028 = vdwg.mxu0
        %2029 = vmatprep.subr.bf16.mxu0 %v1972
        %2030 = vmatpush1.bf16.msra.mxu0 %v1956
        %2031 = vmatprep.subr.bf16.mxu0 %v1973
        %2032 = vmatpush1.bf16.msra.mxu0 %v1957
        %2033 = vmatprep.subr.bf16.mxu0 %v1974
        %2034 = vmatpush1.bf16.msra.mxu0 %v1958
        %2035 = vmatprep.subr.bf16.mxu0 %v1975
        %2036 = vmatpush1.bf16.msra.mxu0 %v1959
        %2037 = vmatprep.subr.bf16.mxu0 %v1976
        %2038 = vmatpush1.bf16.msra.mxu0 %v1960
        %2039 = vmatprep.subr.bf16.mxu0 %v1977
        %2040 = vmatpush1.bf16.msra.mxu0 %v1961
        %2041 = vmatprep.subr.bf16.mxu0 %v1978
        %2042 = vmatpush1.bf16.msra.mxu0 %v1962
        %2043 = vmatprep.subr.bf16.mxu0 %v1979
        %2044 = vmatpush1.bf16.msra.mxu0 %v1963
        %2045 = vmatprep.subr.bf16.mxu0 %v1980
        %2046 = vmatpush1.bf16.msra.mxu0 %v1964
        %2047 = vmatprep.subr.bf16.mxu0 %v1981
        %2048 = vmatpush1.bf16.msra.mxu0 %v1965
        %2049 = vmatprep.subr.bf16.mxu0 %v1982
        %2050 = vmatpush1.bf16.msra.mxu0 %v1966
        %2051 = vmatprep.subr.bf16.mxu0 %v1983
        %2052 = vmatpush1.bf16.msra.mxu0 %v1967
        %2053 = vmatprep.subr.bf16.mxu0 %v1984
        %2054 = vmatpush1.bf16.msra.mxu0 %v1968
        %2055 = vmatprep.subr.bf16.mxu0 %v1985
        %2056 = vmatpush1.bf16.msra.mxu0 %v1969
        %2057 = vmatprep.subr.bf16.mxu0 %v1986
        %2058 = vmatpush1.bf16.msra.mxu0 %v1970
        %2059 = vmatprep.subr.bf16.mxu0 %v1987
        %2060 = vmatpush1.bf16.msra.mxu0 %v1971
        %2061 = vmatprep.mubr.bf16.mxu0 %v523
        %2062 = vmatmul.mubr.bf16.gmra.mrb[0].mxu0 %v522
        %v2063 = vpop.f32.mrb[0].mxu0
        %v2064 = vadd.f32 0.0, %v2063
        %v2065 = vpop.f32.mrb[0].mxu0
        %v2066 = vadd.f32 0.0, %v2065
        %v2067 = vpop.f32.mrb[0].mxu0
        %v2068 = vpop.f32.mrb[0].mxu0
        %2069 = vdwg.mxu0
        %v2070 = vsub.f32 %v2023, %v2066
        %v2071 = vmul.f32 %v2070, 0.0625
        %v2072 = vadd.f32 %v2025, %v2064
        %v2073 = vmul.f32 %v2072, 0.0625
        %v2075 = vcombine.high %v2071, %v2071
        %v2077 = vunpack.c.l.s4 1983009808
        %v2078 = vunpack.c.0.s8 %v2077
        %v2079 = vlaneseq
        %v2080 = vshrl.u32 %v2079, 7
        %v2081 = vsub.s32 %v2078, %v2080
        %v2082 = vrot.slane %v2071, %v2081
        %v2084 = vunpack.c.l.s4 1983009808
        %v2085 = vunpack.c.0.s8 %v2084
        %v2086 = vlaneseq
        %v2087 = vshrl.u32 %v2086, 7
        %v2088 = vsub.s32 %v2085, %v2087
        %v2089 = vrot.slane %v2075, %v2088
        %v2090 = vcombine.high %v2082, %v2082
        %v2091 = vcombine.high %v2089, %v2089
        %2096 = vst [vmem:[%s423] sm:$0x3] %v2082
        %2097 = vst [vmem:[%s423 + $0x2] sm:$0x3] %v2090
        %2098 = vst [vmem:[%s423 + $0x4] sm:$0x3] %v2089
        %2099 = vst [vmem:[%s423 + $0x6] sm:$0x3] %v2091
        %v2101 = vcombine.high %v2073, %v2073
        %v2103 = vunpack.c.l.s4 1983009808
        %v2104 = vunpack.c.0.s8 %v2103
        %v2105 = vlaneseq
        %v2106 = vshrl.u32 %v2105, 7
        %v2107 = vsub.s32 %v2104, %v2106
        %v2108 = vrot.slane %v2073, %v2107
        %v2110 = vunpack.c.l.s4 1983009808
        %v2111 = vunpack.c.0.s8 %v2110
        %v2112 = vlaneseq
        %v2113 = vshrl.u32 %v2112, 7
        %v2114 = vsub.s32 %v2111, %v2113
        %v2115 = vrot.slane %v2101, %v2114
        %v2116 = vcombine.high %v2108, %v2108
        %v2117 = vcombine.high %v2115, %v2115
        %2122 = vst [vmem:[%s430] sm:$0x3] %v2108
        %2123 = vst [vmem:[%s430 + $0x2] sm:$0x3] %v2116
        %2124 = vst [vmem:[%s430 + $0x4] sm:$0x3] %v2115
        %2125 = vst [vmem:[%s430 + $0x6] sm:$0x3] %v2117
        %s2126 = sand.u32 %s187, 1
        %s2127 = scalar_lea.sflag [#allocation4], %s2126
        %s2128 = sand.u32 %s187, 1
        %s2129 = smul.addr %s2128, 8
        %s2130 = scalar_lea.vmem [#allocation10], %s2129
        %s2131 = sand.u32 %s215, 1
        %s2132 = scalar_lea.sflag [#allocation12], %s2131
        %s2133 = sand.u32 %s215, 1
        %s2134 = smul.addr %s2133, 8
        %s2135 = scalar_lea.vmem [#allocation11], %s2134
        // Predicated region
        $region57: #{tpu_custom_call.1} parent=39 // pred_check
          %p2136 = pneg %p197
        $region58: #{tpu_custom_call.1} parent=39 // pred_check_branch
          %2138 = sbr.rel (%p2136) target = $region60
        $region59: #{tpu_custom_call.1} parent=39 // pred_region
          %s2140 = ssub.s32 128, 128
          %2141 = vsyncadd %s2127, %s2140
          %s2142 = smul.addr %s37, 4
          %s2143 = sadd.s32 %s38, %s2142
          %s2144 = smul.addr %s2143, 32
          %s2145 = scalar_lea.hbm %s5, %s2144
          %s2146 = sshll.u32 %s2130, 4
          %s2147 = int_to_ptr.vmem [resolvable:$true] %s2146
          %2152 = dma.vmem_to_hbm [thread:$0]  %s2147, 128, %s2145, %s2127, 32, 32, 2
        $region60: #{tpu_custom_call.1} parent=39 // pred_fallthru
          _
        // Predicated region
        $region61: #{tpu_custom_call.1} parent=39 // pred_check
          %p2153 = pneg %p225
        $region62: #{tpu_custom_call.1} parent=39 // pred_check_branch
          %2155 = sbr.rel (%p2153) target = $region64
        $region63: #{tpu_custom_call.1} parent=39 // pred_region
          %s2157 = ssub.s32 128, 128
          %2158 = vsyncadd %s2132, %s2157
          %s2159 = smul.addr %s37, 4
          %s2160 = sadd.s32 %s38, %s2159
          %s2161 = smul.addr %s2160, 32
          %s2162 = scalar_lea.hbm %s6, %s2161
          %s2163 = sshll.u32 %s2135, 4
          %s2164 = int_to_ptr.vmem [resolvable:$true] %s2163
          %2169 = dma.vmem_to_hbm [thread:$0]  %s2164, 128, %s2162, %s2132, 32, 32, 2
        $region64: #{tpu_custom_call.1} parent=39 // pred_fallthru
          _
      $region40: #{tpu_custom_call.1} parent=5 // pred_fallthru
        _
      %p2170 = scmp.le.s32.totalorder 2, %s28
      // Predicated region
      $region65: #{tpu_custom_call.1} parent=5 // pred_check
        %p2171 = pneg %p2170
      $region66: #{tpu_custom_call.1} parent=5 // pred_check_branch
        %2173 = sbr.rel (%p2171) target = $region68
      $region67: #{tpu_custom_call.1} parent=5 // pred_region
        %s2174 = ssub.s32 %s28, 2
        // Predicated region
        $region69: #{tpu_custom_call.1} parent=67 // pred_check
          %p2175 = pneg %p203
        $region70: #{tpu_custom_call.1} parent=67 // pred_check_branch
          %2177 = sbr.rel (%p2175) target = $region72
        $region71: #{tpu_custom_call.1} parent=67 // pred_region
          %s2178 = sand.u32 %s188, 1
          %s2179 = scalar_lea.sflag [#allocation4], %s2178
          %s2180 = sand.u32 %s188, 1
          %s2181 = smul.addr %s2180, 8
          %s2182 = scalar_lea.vmem [#allocation10], %s2181
          %2183 = dma.done %s2179, 128
        $region72: #{tpu_custom_call.1} parent=67 // pred_fallthru
          _
        // Predicated region
        $region73: #{tpu_custom_call.1} parent=67 // pred_check
          %p2184 = pneg %p231
        $region74: #{tpu_custom_call.1} parent=67 // pred_check_branch
          %2186 = sbr.rel (%p2184) target = $region76
        $region75: #{tpu_custom_call.1} parent=67 // pred_region
          %s2187 = sand.u32 %s216, 1
          %s2188 = scalar_lea.sflag [#allocation12], %s2187
          %s2189 = sand.u32 %s216, 1
          %s2190 = smul.addr %s2189, 8
          %s2191 = scalar_lea.vmem [#allocation11], %s2190
          %2192 = dma.done %s2188, 128
        $region76: #{tpu_custom_call.1} parent=67 // pred_fallthru
          _
      $region68: #{tpu_custom_call.1} parent=5 // pred_fallthru
        _
    $region6: #{tpu_custom_call.1} parent=1 // loop_footer
      %s32 = sadd.s32 1, %s28
    $region7: #{tpu_custom_call.1} parent=1 // loop_footer_branch
      %27 = sbr.rel target = $region3
    $region8: #{tpu_custom_call.1} parent=1 // loop_exit
      _
    %2193 = vsyncpa [#allocation3], 1
    %s2194 = scalar_lea.sflag [#allocation3], 1
    %2195 = vsyncpa %s2194, 1
    %2196 = vsyncpa [#allocation6], 1
    %s2197 = scalar_lea.sflag [#allocation6], 1
    %2198 = vsyncpa %s2197, 1
    %2199 = vsyncpa [#allocation9], 1
    %s2200 = scalar_lea.sflag [#allocation9], 1
    %2201 = vsyncpa %s2200, 1
    %2202 = vsyncpa [#allocation4], 1
    %s2203 = scalar_lea.sflag [#allocation4], 1
    %2204 = vsyncpa %s2203, 1
    %2205 = vsyncpa [#allocation12], 1
    %s2206 = scalar_lea.sflag [#allocation12], 1
    %2207 = vsyncpa %s2206, 1

</llo_original>
